<compile_context>
chip_gen: v7x
topology: tpu7x:2x2x1
jax: 0.10.0
libtpu: 0.0.40
codegen_flags: <defaults>
</compile_context>

<pallas_src>
import numpy as np
import jax
import jax.numpy as jnp
from jax.experimental import pallas as pl
from jax.experimental.pallas import tpu as pltpu

LEAKY_SLOPE = 0.01   # nn.LeakyReLU() default
BN_EPS = 1e-5        # nn.BatchNorm2d default


# ---------------------------------------------------------------------------
# Pallas kernel: entire Darknet residual block, one image per grid step
# ---------------------------------------------------------------------------
def _leaky(y):
    return jnp.where(y > 0, y, LEAKY_SLOPE * y)


def _conv1x1(a, m_ref, shift_ref):
    # a: (H, W*C1); m_ref: (1, W*C1, W*C2) block-diagonal; shift: (1, W*C2)
    y = jnp.dot(a, m_ref[0], preferred_element_type=jnp.float32)
    return y + shift_ref[...]


def _conv3x3(a, m_ref, shift_ref, s_up_row, s_dn_row):
    # a: (H, W*C1); m_ref: (3, W*C1, W*C2) banded along the W axis.
    # Row taps come from (H,H) shift matmuls -> exact zero pad at top/bottom.
    a_m1 = jnp.dot(s_up_row, a, preferred_element_type=jnp.float32)   # a[h-1]
    a_p1 = jnp.dot(s_dn_row, a, preferred_element_type=jnp.float32)   # a[h+1]
    y = jnp.dot(a, m_ref[1], preferred_element_type=jnp.float32)
    y = y + jnp.dot(a_m1, m_ref[0], preferred_element_type=jnp.float32)
    y = y + jnp.dot(a_p1, m_ref[2], preferred_element_type=jnp.float32)
    return y + shift_ref[...]


def _block_kernel(x_ref, wd_ref, sd_ref, wu_ref, su_ref,
                  w1_ref, s1_ref, w2_ref, s2_ref, o_ref):
    H = x_ref.shape[0]
    x = x_ref[...]

    # (H,H) row-shift matrices: (s_up_row @ a)[h] = a[h-1] (row 0 -> 0),
    #                           (s_dn_row @ a)[h] = a[h+1] (row H-1 -> 0).
    r = jax.lax.broadcasted_iota(jnp.int32, (H, H), 0)
    c = jax.lax.broadcasted_iota(jnp.int32, (H, H), 1)
    s_up_row = (r == c + 1).astype(jnp.float32)
    s_dn_row = (r + 1 == c).astype(jnp.float32)

    a = _leaky(_conv1x1(x, wd_ref, sd_ref))                        # down_block 1x1
    b = _leaky(_conv3x3(a, wu_ref, su_ref, s_up_row, s_dn_row))    # up_block   3x3
    y = _leaky(_conv1x1(b, w1_ref, s1_ref))                        # res.conv1  1x1
    d = _leaky(_conv3x3(y, w2_ref, s2_ref, s_up_row, s_dn_row))    # res.conv2  3x3
    o_ref[...] = (b + d).astype(o_ref.dtype)                       # residual add


def _const_spec(arr):
    nd = arr.ndim
    return pl.BlockSpec(arr.shape, lambda n, _nd=nd: (0,) * _nd)


@jax.jit
def darknet_residual_block(x_nchw, params):
    N, C, H, W = x_nchw.shape
    WC = W * C
    # NCHW (PyTorch) -> (N*H, W*C) slabs; only entry/exit layout passes.
    x = jnp.transpose(x_nchw, (0, 2, 3, 1)).reshape(N * H, WC)
    weight_args = (params["wd"], params["sd"], params["wu"], params["su"],
                   params["w1"], params["s1"], params["w2"], params["s2"])
    y = pl.pallas_call(
        _block_kernel,
        out_shape=jax.ShapeDtypeStruct((N * H, WC), jnp.float32),
        grid=(N,),
        in_specs=[pl.BlockSpec((H, WC), lambda n: (n, 0))]
                 + [_const_spec(a) for a in weight_args],
        out_specs=pl.BlockSpec((H, WC), lambda n: (n, 0)),
        compiler_params=pltpu.CompilerParams(
            dimension_semantics=("parallel",),
            vmem_limit_bytes=32 * 1024 * 1024),
    )(x, *weight_args)
    return jnp.transpose(y.reshape(N, H, W, C), (0, 3, 1, 2))


# ---------------------------------------------------------------------------
# Host-side parameter packing: fold BN, build banded matmul weights
# ---------------------------------------------------------------------------
def _fold_bn(w, b):
    """Fold eval-mode BatchNorm2d (gamma=1, beta=0, mean=0, var=1) into conv w/b."""
    c2 = w.shape[0]
    gamma = np.ones((c2,), np.float32)
    beta = np.zeros((c2,), np.float32)
    mean = np.zeros((c2,), np.float32)
    var = np.ones((c2,), np.float32)
    scale = gamma / np.sqrt(var + BN_EPS)
    w_f = np.asarray(w) * scale[:, None, None, None]
    shift = (np.asarray(b) - mean) * scale + beta
    return w_f.astype(np.float32), shift.astype(np.float32)


def _banded_weight(w_folded, w_spatial):
    """(C2, C1, k, k) torch-layout conv weight -> (k, W*C1, W*C2) banded matrices."""
    c2, c1, k, _ = w_folded.shape
    p = (k - 1) // 2
    m = np.zeros((k, w_spatial * c1, w_spatial * c2), np.float32)
    for ky in range(k):
        for wo in range(w_spatial):
            for kx in range(k):
                u = wo + kx - p
                if 0 <= u < w_spatial:
                    m[ky, u * c1:(u + 1) * c1, wo * c2:(wo + 1) * c2] = \
                        w_folded[:, :, ky, kx].T
    return jnp.asarray(m)


def _tiled_shift(shift, w_spatial):
    return jnp.asarray(np.tile(shift, w_spatial).reshape(1, w_spatial * shift.shape[0]))


def _conv_init(kw, kb, c1, c2, k):
    """PyTorch-default-like Conv2d init, deterministic from the given keys."""
    fan_in = c1 * k * k
    bound = 1.0 / np.sqrt(fan_in)
    w = jax.random.uniform(kw, (c2, c1, k, k), jnp.float32, -bound, bound)
    b = jax.random.uniform(kb, (c2,), jnp.float32, -bound, bound)
    return w, b


def make_params(key, c, w_spatial):
    """Returns (raw conv params for the JAX reference, packed params for the kernel)."""
    ch = c // 2
    ks = jax.random.split(key, 8)
    wd, bd = _conv_init(ks[0], ks[1], c, ch, 1)    # down_block: CBL(c, c/2, 1, 1, 0)
    wu, bu = _conv_init(ks[2], ks[3], ch, c, 3)    # up_block:   CBL(c/2, c, 3, 1, 1)
    w1, b1 = _conv_init(ks[4], ks[5], c, c, 1)     # res.conv1:  CBL(c, c, 1, 1, 0)
    w2, b2 = _conv_init(ks[6], ks[7], c, c, 3)     # res.conv2:  CBL(c, c, 3, 1, 1)
    raw = dict(wd=wd, bd=bd, wu=wu, bu=bu, w1=w1, b1=b1, w2=w2, b2=b2)

    packed = {}
    for name, (w, b) in (("d", (wd, bd)), ("u", (wu, bu)),
                         ("1", (w1, b1)), ("2", (w2, b2))):
        wf, shift = _fold_bn(w, b)
        packed["w" + name] = _banded_weight(wf, w_spatial)
        packed["s" + name] = _tiled_shift(shift, w_spatial)
    return raw, packed


# ---------------------------------------------------------------------------
# Pure-JAX reference (matches the PyTorch module, eval-mode BN)
# ---------------------------------------------------------------------------
def _cbl_ref(x, w, b):
    k = w.shape[-1]
    p = (k - 1) // 2
    y = jax.lax.conv_general_dilated(
        x, w, window_strides=(1, 1), padding=[(p, p), (p, p)],
        dimension_numbers=("NCHW", "OIHW", "NCHW"))
    y = y + b[None, :, None, None]
    y = y * (1.0 / jnp.sqrt(1.0 + BN_EPS))   # eval-mode BN at default init
    return jnp.where(y > 0, y, LEAKY_SLOPE * y)


def darknet_reference(x, raw):
    a = _cbl_ref(x, raw["wd"], raw["bd"])
    b = _cbl_ref(a, raw["wu"], raw["bu"])
    y = _cbl_ref(b, raw["w1"], raw["b1"])
    d = _cbl_ref(y, raw["w2"], raw["b2"])
    return b + d


if __name__ == "__main__":
    N, C, H, W = 2, 4, 16, 16
    key = jax.random.PRNGKey(0)
    kx, kp = jax.random.split(key)
    x = jax.random.normal(kx, (N, C, H, W), jnp.float32)
    raw, packed = make_params(kp, C, W)

    out = darknet_residual_block(x, packed)
    jax.block_until_ready(out)
    assert out.shape == (N, C, H, W)

    ref = darknet_reference(x, raw)
    np.testing.assert_allclose(np.asarray(out), np.asarray(ref), rtol=1e-3, atol=1e-3)
    print("KERNEL_OK")
</pallas_src>

<mosaic_0001>
module attributes {stable_mosaic.version = 11 : i64} {
  func.func @_block_kernel(%arg0: i32, %arg1: memref<16x64xf32, #tpu.memory_space<vmem>>, %arg2: memref<1x64x32xf32, #tpu.memory_space<vmem>>, %arg3: memref<1x32xf32, #tpu.memory_space<vmem>>, %arg4: memref<3x32x64xf32, #tpu.memory_space<vmem>>, %arg5: memref<1x64xf32, #tpu.memory_space<vmem>>, %arg6: memref<1x64x64xf32, #tpu.memory_space<vmem>>, %arg7: memref<1x64xf32, #tpu.memory_space<vmem>>, %arg8: memref<3x64x64xf32, #tpu.memory_space<vmem>>, %arg9: memref<1x64xf32, #tpu.memory_space<vmem>>, %arg10: memref<16x64xf32, #tpu.memory_space<vmem>>) attributes {dimension_semantics = [#tpu.dimension_semantics<parallel>], iteration_bounds = array<i64: 2>, scalar_prefetch = 0 : i64, scratch_operands = 0 : i64, tpu.core_type = #tpu.core_type<tc>, window_params = [{transform_indices = @transform_0, window_bounds = array<i64: 16, 64>}, {pipeline_mode = #tpu.pipeline_mode<synchronous>, transform_indices = @transform_1, window_bounds = array<i64: 1, 64, 32>}, {pipeline_mode = #tpu.pipeline_mode<synchronous>, transform_indices = @transform_2, window_bounds = array<i64: 1, 32>}, {pipeline_mode = #tpu.pipeline_mode<synchronous>, transform_indices = @transform_3, window_bounds = array<i64: 3, 32, 64>}, {pipeline_mode = #tpu.pipeline_mode<synchronous>, transform_indices = @transform_4, window_bounds = array<i64: 1, 64>}, {pipeline_mode = #tpu.pipeline_mode<synchronous>, transform_indices = @transform_5, window_bounds = array<i64: 1, 64, 64>}, {pipeline_mode = #tpu.pipeline_mode<synchronous>, transform_indices = @transform_6, window_bounds = array<i64: 1, 64>}, {pipeline_mode = #tpu.pipeline_mode<synchronous>, transform_indices = @transform_7, window_bounds = array<i64: 3, 64, 64>}, {pipeline_mode = #tpu.pipeline_mode<synchronous>, transform_indices = @transform_8, window_bounds = array<i64: 1, 64>}, {transform_indices = @transform_9, window_bounds = array<i64: 16, 64>}]} {
    %c0 = arith.constant 0 : index
    %c0_0 = arith.constant 0 : index
    %0 = vector.load %arg1[%c0, %c0_0] : memref<16x64xf32, #tpu.memory_space<vmem>>, vector<16x64xf32>
    %1 = tpu.iota {dimensions = array<i32: 0>} : vector<16x16xi32>
    %2 = tpu.iota {dimensions = array<i32: 1>} : vector<16x16xi32>
    %c1_i32 = arith.constant 1 : i32
    %3 = vector.broadcast %c1_i32 : i32 to vector<16x16xi32>
    %4 = arith.addi %2, %3 : vector<16x16xi32>
    %5 = arith.cmpi eq, %1, %4 : vector<16x16xi32>
    %6 = arith.extui %5 : vector<16x16xi1> to vector<16x16xi32>
    %7 = arith.sitofp %6 : vector<16x16xi32> to vector<16x16xf32>
    %c1_i32_1 = arith.constant 1 : i32
    %8 = vector.broadcast %c1_i32_1 : i32 to vector<16x16xi32>
    %9 = arith.addi %1, %8 : vector<16x16xi32>
    %10 = arith.cmpi eq, %9, %2 : vector<16x16xi32>
    %11 = arith.extui %10 : vector<16x16xi1> to vector<16x16xi32>
    %12 = arith.sitofp %11 : vector<16x16xi32> to vector<16x16xf32>
    %c0_2 = arith.constant 0 : index
    %c0_3 = arith.constant 0 : index
    %c0_4 = arith.constant 0 : index
    %13 = vector.load %arg2[%c0_2, %c0_3, %c0_4] : memref<1x64x32xf32, #tpu.memory_space<vmem>>, vector<1x64x32xf32>
    %14 = vector.shape_cast %13 : vector<1x64x32xf32> to vector<64x32xf32>
    %cst = arith.constant dense<0.000000e+00> : vector<16x32xf32>
    %15 = tpu.matmul %0, %14, %cst {dimension_numbers = #tpu.dot_dimension_numbers<[1], [0], [0], [1], [0, 0, 1, 1], [], []>} : vector<16x64xf32>, vector<64x32xf32>, vector<16x32xf32> -> vector<16x32xf32>
    %c0_5 = arith.constant 0 : index
    %c0_6 = arith.constant 0 : index
    %16 = vector.load %arg3[%c0_5, %c0_6] : memref<1x32xf32, #tpu.memory_space<vmem>>, vector<1x32xf32>
    %17 = vector.broadcast %16 : vector<1x32xf32> to vector<16x32xf32>
    %18 = arith.addf %15, %17 : vector<16x32xf32>
    %cst_7 = arith.constant 0.000000e+00 : f32
    %19 = vector.broadcast %cst_7 : f32 to vector<16x32xf32>
    %20 = arith.cmpf ogt, %18, %19 : vector<16x32xf32>
    %cst_8 = arith.constant 0.00999999977 : f32
    %21 = vector.broadcast %cst_8 : f32 to vector<16x32xf32>
    %22 = arith.mulf %21, %18 : vector<16x32xf32>
    %23 = arith.select %20, %18, %22 : vector<16x32xi1>, vector<16x32xf32>
    %cst_9 = arith.constant dense<0.000000e+00> : vector<16x32xf32>
    %24 = tpu.matmul %7, %23, %cst_9 {dimension_numbers = #tpu.dot_dimension_numbers<[1], [0], [0], [1], [0, 0, 1, 1], [], []>} : vector<16x16xf32>, vector<16x32xf32>, vector<16x32xf32> -> vector<16x32xf32>
    %cst_10 = arith.constant dense<0.000000e+00> : vector<16x32xf32>
    %25 = tpu.matmul %12, %23, %cst_10 {dimension_numbers = #tpu.dot_dimension_numbers<[1], [0], [0], [1], [0, 0, 1, 1], [], []>} : vector<16x16xf32>, vector<16x32xf32>, vector<16x32xf32> -> vector<16x32xf32>
    %c1 = arith.constant 1 : index
    %c0_11 = arith.constant 0 : index
    %c0_12 = arith.constant 0 : index
    %26 = vector.load %arg4[%c1, %c0_11, %c0_12] : memref<3x32x64xf32, #tpu.memory_space<vmem>>, vector<1x32x64xf32>
    %27 = vector.shape_cast %26 : vector<1x32x64xf32> to vector<32x64xf32>
    %cst_13 = arith.constant dense<0.000000e+00> : vector<16x64xf32>
    %28 = tpu.matmul %23, %27, %cst_13 {dimension_numbers = #tpu.dot_dimension_numbers<[1], [0], [0], [1], [0, 0, 1, 1], [], []>} : vector<16x32xf32>, vector<32x64xf32>, vector<16x64xf32> -> vector<16x64xf32>
    %c0_14 = arith.constant 0 : index
    %c0_15 = arith.constant 0 : index
    %c0_16 = arith.constant 0 : index
    %29 = vector.load %arg4[%c0_14, %c0_15, %c0_16] : memref<3x32x64xf32, #tpu.memory_space<vmem>>, vector<1x32x64xf32>
    %30 = vector.shape_cast %29 : vector<1x32x64xf32> to vector<32x64xf32>
    %cst_17 = arith.constant dense<0.000000e+00> : vector<16x64xf32>
    %31 = tpu.matmul %24, %30, %cst_17 {dimension_numbers = #tpu.dot_dimension_numbers<[1], [0], [0], [1], [0, 0, 1, 1], [], []>} : vector<16x32xf32>, vector<32x64xf32>, vector<16x64xf32> -> vector<16x64xf32>
    %32 = arith.addf %28, %31 : vector<16x64xf32>
    %c2 = arith.constant 2 : index
    %c0_18 = arith.constant 0 : index
    %c0_19 = arith.constant 0 : index
    %33 = vector.load %arg4[%c2, %c0_18, %c0_19] : memref<3x32x64xf32, #tpu.memory_space<vmem>>, vector<1x32x64xf32>
    %34 = vector.shape_cast %33 : vector<1x32x64xf32> to vector<32x64xf32>
    %cst_20 = arith.constant dense<0.000000e+00> : vector<16x64xf32>
    %35 = tpu.matmul %25, %34, %cst_20 {dimension_numbers = #tpu.dot_dimension_numbers<[1], [0], [0], [1], [0, 0, 1, 1], [], []>} : vector<16x32xf32>, vector<32x64xf32>, vector<16x64xf32> -> vector<16x64xf32>
    %36 = arith.addf %32, %35 : vector<16x64xf32>
    %c0_21 = arith.constant 0 : index
    %c0_22 = arith.constant 0 : index
    %37 = vector.load %arg5[%c0_21, %c0_22] : memref<1x64xf32, #tpu.memory_space<vmem>>, vector<1x64xf32>
    %38 = vector.broadcast %37 : vector<1x64xf32> to vector<16x64xf32>
    %39 = arith.addf %36, %38 : vector<16x64xf32>
    %cst_23 = arith.constant 0.000000e+00 : f32
    %40 = vector.broadcast %cst_23 : f32 to vector<16x64xf32>
    %41 = arith.cmpf ogt, %39, %40 : vector<16x64xf32>
    %cst_24 = arith.constant 0.00999999977 : f32
    %42 = vector.broadcast %cst_24 : f32 to vector<16x64xf32>
    %43 = arith.mulf %42, %39 : vector<16x64xf32>
    %44 = arith.select %41, %39, %43 : vector<16x64xi1>, vector<16x64xf32>
    %c0_25 = arith.constant 0 : index
    %c0_26 = arith.constant 0 : index
    %c0_27 = arith.constant 0 : index
    %45 = vector.load %arg6[%c0_25, %c0_26, %c0_27] : memref<1x64x64xf32, #tpu.memory_space<vmem>>, vector<1x64x64xf32>
    %46 = vector.shape_cast %45 : vector<1x64x64xf32> to vector<64x64xf32>
    %cst_28 = arith.constant dense<0.000000e+00> : vector<16x64xf32>
    %47 = tpu.matmul %44, %46, %cst_28 {dimension_numbers = #tpu.dot_dimension_numbers<[1], [0], [0], [1], [0, 0, 1, 1], [], []>} : vector<16x64xf32>, vector<64x64xf32>, vector<16x64xf32> -> vector<16x64xf32>
    %c0_29 = arith.constant 0 : index
    %c0_30 = arith.constant 0 : index
    %48 = vector.load %arg7[%c0_29, %c0_30] : memref<1x64xf32, #tpu.memory_space<vmem>>, vector<1x64xf32>
    %49 = vector.broadcast %48 : vector<1x64xf32> to vector<16x64xf32>
    %50 = arith.addf %47, %49 : vector<16x64xf32>
    %cst_31 = arith.constant 0.000000e+00 : f32
    %51 = vector.broadcast %cst_31 : f32 to vector<16x64xf32>
    %52 = arith.cmpf ogt, %50, %51 : vector<16x64xf32>
    %cst_32 = arith.constant 0.00999999977 : f32
    %53 = vector.broadcast %cst_32 : f32 to vector<16x64xf32>
    %54 = arith.mulf %53, %50 : vector<16x64xf32>
    %55 = arith.select %52, %50, %54 : vector<16x64xi1>, vector<16x64xf32>
    %cst_33 = arith.constant dense<0.000000e+00> : vector<16x64xf32>
    %56 = tpu.matmul %7, %55, %cst_33 {dimension_numbers = #tpu.dot_dimension_numbers<[1], [0], [0], [1], [0, 0, 1, 1], [], []>} : vector<16x16xf32>, vector<16x64xf32>, vector<16x64xf32> -> vector<16x64xf32>
    %cst_34 = arith.constant dense<0.000000e+00> : vector<16x64xf32>
    %57 = tpu.matmul %12, %55, %cst_34 {dimension_numbers = #tpu.dot_dimension_numbers<[1], [0], [0], [1], [0, 0, 1, 1], [], []>} : vector<16x16xf32>, vector<16x64xf32>, vector<16x64xf32> -> vector<16x64xf32>
    %c1_35 = arith.constant 1 : index
    %c0_36 = arith.constant 0 : index
    %c0_37 = arith.constant 0 : index
    %58 = vector.load %arg8[%c1_35, %c0_36, %c0_37] : memref<3x64x64xf32, #tpu.memory_space<vmem>>, vector<1x64x64xf32>
    %59 = vector.shape_cast %58 : vector<1x64x64xf32> to vector<64x64xf32>
    %cst_38 = arith.constant dense<0.000000e+00> : vector<16x64xf32>
    %60 = tpu.matmul %55, %59, %cst_38 {dimension_numbers = #tpu.dot_dimension_numbers<[1], [0], [0], [1], [0, 0, 1, 1], [], []>} : vector<16x64xf32>, vector<64x64xf32>, vector<16x64xf32> -> vector<16x64xf32>
    %c0_39 = arith.constant 0 : index
    %c0_40 = arith.constant 0 : index
    %c0_41 = arith.constant 0 : index
    %61 = vector.load %arg8[%c0_39, %c0_40, %c0_41] : memref<3x64x64xf32, #tpu.memory_space<vmem>>, vector<1x64x64xf32>
    %62 = vector.shape_cast %61 : vector<1x64x64xf32> to vector<64x64xf32>
    %cst_42 = arith.constant dense<0.000000e+00> : vector<16x64xf32>
    %63 = tpu.matmul %56, %62, %cst_42 {dimension_numbers = #tpu.dot_dimension_numbers<[1], [0], [0], [1], [0, 0, 1, 1], [], []>} : vector<16x64xf32>, vector<64x64xf32>, vector<16x64xf32> -> vector<16x64xf32>
    %64 = arith.addf %60, %63 : vector<16x64xf32>
    %c2_43 = arith.constant 2 : index
    %c0_44 = arith.constant 0 : index
    %c0_45 = arith.constant 0 : index
    %65 = vector.load %arg8[%c2_43, %c0_44, %c0_45] : memref<3x64x64xf32, #tpu.memory_space<vmem>>, vector<1x64x64xf32>
    %66 = vector.shape_cast %65 : vector<1x64x64xf32> to vector<64x64xf32>
    %cst_46 = arith.constant dense<0.000000e+00> : vector<16x64xf32>
    %67 = tpu.matmul %57, %66, %cst_46 {dimension_numbers = #tpu.dot_dimension_numbers<[1], [0], [0], [1], [0, 0, 1, 1], [], []>} : vector<16x64xf32>, vector<64x64xf32>, vector<16x64xf32> -> vector<16x64xf32>
    %68 = arith.addf %64, %67 : vector<16x64xf32>
    %c0_47 = arith.constant 0 : index
    %c0_48 = arith.constant 0 : index
    %69 = vector.load %arg9[%c0_47, %c0_48] : memref<1x64xf32, #tpu.memory_space<vmem>>, vector<1x64xf32>
    %70 = vector.broadcast %69 : vector<1x64xf32> to vector<16x64xf32>
    %71 = arith.addf %68, %70 : vector<16x64xf32>
    %cst_49 = arith.constant 0.000000e+00 : f32
    %72 = vector.broadcast %cst_49 : f32 to vector<16x64xf32>
    %73 = arith.cmpf ogt, %71, %72 : vector<16x64xf32>
    %cst_50 = arith.constant 0.00999999977 : f32
    %74 = vector.broadcast %cst_50 : f32 to vector<16x64xf32>
    %75 = arith.mulf %74, %71 : vector<16x64xf32>
    %76 = arith.select %73, %71, %75 : vector<16x64xi1>, vector<16x64xf32>
    %77 = arith.addf %44, %76 : vector<16x64xf32>
    %c0_51 = arith.constant 0 : index
    %c0_52 = arith.constant 0 : index
    %78 = vector.load %arg10[%c0_51, %c0_52] : memref<16x64xf32, #tpu.memory_space<vmem>>, vector<16x64xf32>
    tpu.vector_store %arg10[%c0_51, %c0_52], %77 {strides = array<i32>} : memref<16x64xf32, #tpu.memory_space<vmem>>, vector<16x64xf32>,
    return
  }
  func.func @transform_0(%arg0: i32) -> (i32, i32) {
    %c0_i32 = arith.constant 0 : i32
    %c0_i32_0 = arith.constant 0 : i32
    return %arg0, %c0_i32 : i32, i32
  }
  func.func @transform_1(%arg0: i32) -> (i32, i32, i32) {
    %c0_i32 = arith.constant 0 : i32
    %c0_i32_0 = arith.constant 0 : i32
    %c0_i32_1 = arith.constant 0 : i32
    %c0_i32_2 = arith.constant 0 : i32
    return %c0_i32, %c0_i32_0, %c0_i32_1 : i32, i32, i32
  }
  func.func @transform_2(%arg0: i32) -> (i32, i32) {
    %c0_i32 = arith.constant 0 : i32
    %c0_i32_0 = arith.constant 0 : i32
    %c0_i32_1 = arith.constant 0 : i32
    return %c0_i32, %c0_i32_0 : i32, i32
  }
  func.func @transform_3(%arg0: i32) -> (i32, i32, i32) {
    %c0_i32 = arith.constant 0 : i32
    %c0_i32_0 = arith.constant 0 : i32
    %c0_i32_1 = arith.constant 0 : i32
    %c0_i32_2 = arith.constant 0 : i32
    return %c0_i32, %c0_i32_0, %c0_i32_1 : i32, i32, i32
  }
  func.func @transform_4(%arg0: i32) -> (i32, i32) {
    %c0_i32 = arith.constant 0 : i32
    %c0_i32_0 = arith.constant 0 : i32
    %c0_i32_1 = arith.constant 0 : i32
    return %c0_i32, %c0_i32_0 : i32, i32
  }
  func.func @transform_5(%arg0: i32) -> (i32, i32, i32) {
    %c0_i32 = arith.constant 0 : i32
    %c0_i32_0 = arith.constant 0 : i32
    %c0_i32_1 = arith.constant 0 : i32
    %c0_i32_2 = arith.constant 0 : i32
    return %c0_i32, %c0_i32_0, %c0_i32_1 : i32, i32, i32
  }
  func.func @transform_6(%arg0: i32) -> (i32, i32) {
    %c0_i32 = arith.constant 0 : i32
    %c0_i32_0 = arith.constant 0 : i32
    %c0_i32_1 = arith.constant 0 : i32
    return %c0_i32, %c0_i32_0 : i32, i32
  }
  func.func @transform_7(%arg0: i32) -> (i32, i32, i32) {
    %c0_i32 = arith.constant 0 : i32
    %c0_i32_0 = arith.constant 0 : i32
    %c0_i32_1 = arith.constant 0 : i32
    %c0_i32_2 = arith.constant 0 : i32
    return %c0_i32, %c0_i32_0, %c0_i32_1 : i32, i32, i32
  }
  func.func @transform_8(%arg0: i32) -> (i32, i32) {
    %c0_i32 = arith.constant 0 : i32
    %c0_i32_0 = arith.constant 0 : i32
    %c0_i32_1 = arith.constant 0 : i32
    return %c0_i32, %c0_i32_0 : i32, i32
  }
  func.func @transform_9(%arg0: i32) -> (i32, i32) {
    %c0_i32 = arith.constant 0 : i32
    %c0_i32_0 = arith.constant 0 : i32
    return %arg0, %c0_i32 : i32, i32
  }
}

</mosaic_0001>

<llo_original>
// kernel: darknet_residual_block.1
$region0: #{darknet_residual_block.1}
  #allocation0 [shape = 'u32[]', space=smem, size = 0x4, offset = 0x4, fixed_abs, tag = 'smem constant byte address 0x4 - core index']
  #allocation1 [shape = 'u32[144,128]{1,0:T(1,128)}', space=vmem, size = 0x12000, scoped, tag = 'internal scratch']
  %s0 = inlined_call_operand.vmem [shape: f32[32,64], index: 0, kind: input, shape index: {}]
  %s1 = inlined_call_operand.vmem [shape: f32[1,64,32], index: 1, kind: input, shape index: {}]
  %s2 = inlined_call_operand.vmem [shape: f32[1,32], index: 2, kind: input, shape index: {}]
  %s3 = inlined_call_operand.vmem [shape: f32[3,32,64], index: 3, kind: input, shape index: {}]
  %s4 = inlined_call_operand.vmem [shape: f32[1,64], index: 4, kind: input, shape index: {}]
  %s5 = inlined_call_operand.vmem [shape: f32[1,64,64], index: 5, kind: input, shape index: {}]
  %s6 = inlined_call_operand.vmem [shape: f32[1,64], index: 6, kind: input, shape index: {}]
  %s7 = inlined_call_operand.vmem [shape: f32[3,64,64], index: 7, kind: input, shape index: {}]
  %s8 = inlined_call_operand.vmem [shape: f32[1,64], index: 8, kind: input, shape index: {}]
  %s9 = inlined_call_operand.vmem [shape: f32[32,64], index: 9, kind: output, shape index: {}]
  %s10 = sld [smem:[#allocation0]]
  $region69: #{darknet_residual_block.1} parent=0
    _
  %s12 = ssub.s32 1, %s10
  %s13 = scalar_select 0, %s12, %s10
  loop: start=0, step=1, limit=4
  $region2: #{darknet_residual_block.1} parent=0 // loop_pre_header
    _
  $region3: #{darknet_residual_block.1} parent=0 // loop_header
    %s15 = sphi 0, %s19
    %p16 = scmp.ge.s32.totalorder %s15, 4
    %s25 = sphi 0, %s27
    %s28 = sphi 0, %s25
    %s29 = sphi 0, %s28
    %s45 = sphi 0, %s29
    %s49 = sphi 0, %s49
    %s51 = sphi 0, %s49
    %s52 = sphi 0, %s51
    %s66 = sphi 0, %s52
    %s70 = sphi 0, %s70
    %s72 = sphi 0, %s70
    %s73 = sphi 0, %s72
    %s87 = sphi 0, %s73
    %s91 = sphi 0, %s91
    %s93 = sphi 0, %s91
    %s94 = sphi 0, %s93
    %s108 = sphi 0, %s94
    %s112 = sphi 0, %s112
    %s114 = sphi 0, %s112
    %s115 = sphi 0, %s114
    %s129 = sphi 0, %s115
    %s133 = sphi 0, %s133
    %s135 = sphi 0, %s133
    %s136 = sphi 0, %s135
    %s150 = sphi 0, %s136
    %s154 = sphi 0, %s154
    %s156 = sphi 0, %s154
    %s157 = sphi 0, %s156
    %s171 = sphi 0, %s157
    %s175 = sphi 0, %s175
    %s177 = sphi 0, %s175
    %s178 = sphi 0, %s177
    %s192 = sphi 0, %s178
    %s196 = sphi 0, %s196
    %s198 = sphi 0, %s196
    %s199 = sphi 0, %s198
    %s213 = sphi 0, %s199
    %s219 = sphi 0, %s221
    %s222 = sphi 0, %s219
    %s223 = sphi 0, %s222
    %s239 = sphi 0, %s223
  $region4: #{darknet_residual_block.1} parent=0 // loop_header_branch
    %18 = sbr.rel (%p16) target = $region8
  $region5: #{darknet_residual_block.1} parent=0 // loop_body
    %s20 = ssub.s32 %s15, 1
    %s21 = ssub.s32 %s15, 2
    %s22 = sadd.s32 %s15, 1
    %s23 = ssub.s32 %s15, %s22
    %p24 = scmp.eq.s32.totalorder %s23, 0
    %s26 = sadd.s32 %s25, 1
    %s27 = scalar_select %p24, %s25, %s26
    %p30 = pneg %p24
    %p31 = scmp.eq.s32.totalorder %s15, 1
    %p32 = por %p30, %p31
    %p33 = scmp.ne.s32.totalorder %s25, %s28
    %p34 = scmp.eq.s32.totalorder %s15, 0
    %p35 = por %p33, %p34
    %p36 = scmp.ne.s32.totalorder %s25, %s28
    %p37 = scmp.eq.s32.totalorder %s20, 1
    %p38 = por %p36, %p37
    %p39 = scmp.ne.s32.totalorder %s28, %s29
    %p40 = scmp.eq.s32.totalorder %s20, 0
    %p41 = por %p39, %p40
    %p42 = scmp.ne.s32.totalorder %s28, %s29
    %p43 = scmp.eq.s32.totalorder %s21, 1
    %p44 = por %p42, %p43
    %p46 = scmp.ne.s32.totalorder %s29, %s45
    %p47 = scmp.eq.s32.totalorder %s21, 0
    %p48 = por %p46, %p47
    %s50 = sadd.s32 %s49, 1
    %p53 = scmp.eq.s32.totalorder %s15, 1
    %p54 = scmp.ne.s32.totalorder %s49, %s51
    %p55 = scmp.eq.s32.totalorder %s15, 0
    %p56 = por %p54, %p55
    %p57 = scmp.ne.s32.totalorder %s49, %s51
    %p58 = scmp.eq.s32.totalorder %s20, 1
    %p59 = por %p57, %p58
    %p60 = scmp.ne.s32.totalorder %s51, %s52
    %p61 = scmp.eq.s32.totalorder %s20, 0
    %p62 = por %p60, %p61
    %p63 = scmp.ne.s32.totalorder %s51, %s52
    %p64 = scmp.eq.s32.totalorder %s21, 1
    %p65 = por %p63, %p64
    %p67 = scmp.ne.s32.totalorder %s52, %s66
    %p68 = scmp.eq.s32.totalorder %s21, 0
    %p69 = por %p67, %p68
    %s71 = sadd.s32 %s70, 1
    %p74 = scmp.eq.s32.totalorder %s15, 1
    %p75 = scmp.ne.s32.totalorder %s70, %s72
    %p76 = scmp.eq.s32.totalorder %s15, 0
    %p77 = por %p75, %p76
    %p78 = scmp.ne.s32.totalorder %s70, %s72
    %p79 = scmp.eq.s32.totalorder %s20, 1
    %p80 = por %p78, %p79
    %p81 = scmp.ne.s32.totalorder %s72, %s73
    %p82 = scmp.eq.s32.totalorder %s20, 0
    %p83 = por %p81, %p82
    %p84 = scmp.ne.s32.totalorder %s72, %s73
    %p85 = scmp.eq.s32.totalorder %s21, 1
    %p86 = por %p84, %p85
    %p88 = scmp.ne.s32.totalorder %s73, %s87
    %p89 = scmp.eq.s32.totalorder %s21, 0
    %p90 = por %p88, %p89
    %s92 = sadd.s32 %s91, 1
    %p95 = scmp.eq.s32.totalorder %s15, 1
    %p96 = scmp.ne.s32.totalorder %s91, %s93
    %p97 = scmp.eq.s32.totalorder %s15, 0
    %p98 = por %p96, %p97
    %p99 = scmp.ne.s32.totalorder %s91, %s93
    %p100 = scmp.eq.s32.totalorder %s20, 1
    %p101 = por %p99, %p100
    %p102 = scmp.ne.s32.totalorder %s93, %s94
    %p103 = scmp.eq.s32.totalorder %s20, 0
    %p104 = por %p102, %p103
    %p105 = scmp.ne.s32.totalorder %s93, %s94
    %p106 = scmp.eq.s32.totalorder %s21, 1
    %p107 = por %p105, %p106
    %p109 = scmp.ne.s32.totalorder %s94, %s108
    %p110 = scmp.eq.s32.totalorder %s21, 0
    %p111 = por %p109, %p110
    %s113 = sadd.s32 %s112, 1
    %p116 = scmp.eq.s32.totalorder %s15, 1
    %p117 = scmp.ne.s32.totalorder %s112, %s114
    %p118 = scmp.eq.s32.totalorder %s15, 0
    %p119 = por %p117, %p118
    %p120 = scmp.ne.s32.totalorder %s112, %s114
    %p121 = scmp.eq.s32.totalorder %s20, 1
    %p122 = por %p120, %p121
    %p123 = scmp.ne.s32.totalorder %s114, %s115
    %p124 = scmp.eq.s32.totalorder %s20, 0
    %p125 = por %p123, %p124
    %p126 = scmp.ne.s32.totalorder %s114, %s115
    %p127 = scmp.eq.s32.totalorder %s21, 1
    %p128 = por %p126, %p127
    %p130 = scmp.ne.s32.totalorder %s115, %s129
    %p131 = scmp.eq.s32.totalorder %s21, 0
    %p132 = por %p130, %p131
    %s134 = sadd.s32 %s133, 1
    %p137 = scmp.eq.s32.totalorder %s15, 1
    %p138 = scmp.ne.s32.totalorder %s133, %s135
    %p139 = scmp.eq.s32.totalorder %s15, 0
    %p140 = por %p138, %p139
    %p141 = scmp.ne.s32.totalorder %s133, %s135
    %p142 = scmp.eq.s32.totalorder %s20, 1
    %p143 = por %p141, %p142
    %p144 = scmp.ne.s32.totalorder %s135, %s136
    %p145 = scmp.eq.s32.totalorder %s20, 0
    %p146 = por %p144, %p145
    %p147 = scmp.ne.s32.totalorder %s135, %s136
    %p148 = scmp.eq.s32.totalorder %s21, 1
    %p149 = por %p147, %p148
    %p151 = scmp.ne.s32.totalorder %s136, %s150
    %p152 = scmp.eq.s32.totalorder %s21, 0
    %p153 = por %p151, %p152
    %s155 = sadd.s32 %s154, 1
    %p158 = scmp.eq.s32.totalorder %s15, 1
    %p159 = scmp.ne.s32.totalorder %s154, %s156
    %p160 = scmp.eq.s32.totalorder %s15, 0
    %p161 = por %p159, %p160
    %p162 = scmp.ne.s32.totalorder %s154, %s156
    %p163 = scmp.eq.s32.totalorder %s20, 1
    %p164 = por %p162, %p163
    %p165 = scmp.ne.s32.totalorder %s156, %s157
    %p166 = scmp.eq.s32.totalorder %s20, 0
    %p167 = por %p165, %p166
    %p168 = scmp.ne.s32.totalorder %s156, %s157
    %p169 = scmp.eq.s32.totalorder %s21, 1
    %p170 = por %p168, %p169
    %p172 = scmp.ne.s32.totalorder %s157, %s171
    %p173 = scmp.eq.s32.totalorder %s21, 0
    %p174 = por %p172, %p173
    %s176 = sadd.s32 %s175, 1
    %p179 = scmp.eq.s32.totalorder %s15, 1
    %p180 = scmp.ne.s32.totalorder %s175, %s177
    %p181 = scmp.eq.s32.totalorder %s15, 0
    %p182 = por %p180, %p181
    %p183 = scmp.ne.s32.totalorder %s175, %s177
    %p184 = scmp.eq.s32.totalorder %s20, 1
    %p185 = por %p183, %p184
    %p186 = scmp.ne.s32.totalorder %s177, %s178
    %p187 = scmp.eq.s32.totalorder %s20, 0
    %p188 = por %p186, %p187
    %p189 = scmp.ne.s32.totalorder %s177, %s178
    %p190 = scmp.eq.s32.totalorder %s21, 1
    %p191 = por %p189, %p190
    %p193 = scmp.ne.s32.totalorder %s178, %s192
    %p194 = scmp.eq.s32.totalorder %s21, 0
    %p195 = por %p193, %p194
    %s197 = sadd.s32 %s196, 1
    %p200 = scmp.eq.s32.totalorder %s15, 1
    %p201 = scmp.ne.s32.totalorder %s196, %s198
    %p202 = scmp.eq.s32.totalorder %s15, 0
    %p203 = por %p201, %p202
    %p204 = scmp.ne.s32.totalorder %s196, %s198
    %p205 = scmp.eq.s32.totalorder %s20, 1
    %p206 = por %p204, %p205
    %p207 = scmp.ne.s32.totalorder %s198, %s199
    %p208 = scmp.eq.s32.totalorder %s20, 0
    %p209 = por %p207, %p208
    %p210 = scmp.ne.s32.totalorder %s198, %s199
    %p211 = scmp.eq.s32.totalorder %s21, 1
    %p212 = por %p210, %p211
    %p214 = scmp.ne.s32.totalorder %s199, %s213
    %p215 = scmp.eq.s32.totalorder %s21, 0
    %p216 = por %p214, %p215
    %s217 = ssub.s32 %s15, %s22
    %p218 = scmp.eq.s32.totalorder %s217, 0
    %s220 = sadd.s32 %s219, 1
    %s221 = scalar_select %p218, %s219, %s220
    %p224 = pneg %p218
    %p225 = scmp.eq.s32.totalorder %s15, 1
    %p226 = por %p224, %p225
    %p227 = scmp.ne.s32.totalorder %s219, %s222
    %p228 = scmp.eq.s32.totalorder %s15, 0
    %p229 = por %p227, %p228
    %p230 = scmp.ne.s32.totalorder %s219, %s222
    %p231 = scmp.eq.s32.totalorder %s20, 1
    %p232 = por %p230, %p231
    %p233 = scmp.ne.s32.totalorder %s222, %s223
    %p234 = scmp.eq.s32.totalorder %s20, 0
    %p235 = por %p233, %p234
    %p236 = scmp.ne.s32.totalorder %s222, %s223
    %p237 = scmp.eq.s32.totalorder %s21, 1
    %p238 = por %p236, %p237
    %p240 = scmp.ne.s32.totalorder %s223, %s239
    %p241 = scmp.eq.s32.totalorder %s21, 0
    %p242 = por %p240, %p241
    %p243 = scmp.le.s32.totalorder 1, %s15
    %p244 = scmp.lt.s32.totalorder %s15, 3
    %p245 = pnand %p243, %p244
    %p246 = pneg %p245
    // Predicated region
    $region9: #{darknet_residual_block.1} parent=5 // pred_check
      _
    $region10: #{darknet_residual_block.1} parent=5 // pred_check_branch
      %248 = sbr.rel (%p245) target = $region12
    $region11: #{darknet_residual_block.1} parent=5 // pred_region
      %s249 = ssub.s32 %s15, 1
      // Predicated region
      $region13: #{darknet_residual_block.1} parent=11 // pred_check
        %p250 = pneg %p62
      $region14: #{darknet_residual_block.1} parent=11 // pred_check_branch
        %252 = sbr.rel (%p250) target = $region16
      $region15: #{darknet_residual_block.1} parent=11 // pred_region
        _
      $region16: #{darknet_residual_block.1} parent=11 // pred_fallthru
        _
      // Predicated region
      $region17: #{darknet_residual_block.1} parent=11 // pred_check
        %p253 = pneg %p83
      $region18: #{darknet_residual_block.1} parent=11 // pred_check_branch
        %255 = sbr.rel (%p253) target = $region20
      $region19: #{darknet_residual_block.1} parent=11 // pred_region
        _
      $region20: #{darknet_residual_block.1} parent=11 // pred_fallthru
        _
      // Predicated region
      $region21: #{darknet_residual_block.1} parent=11 // pred_check
        %p256 = pneg %p104
      $region22: #{darknet_residual_block.1} parent=11 // pred_check_branch
        %258 = sbr.rel (%p256) target = $region24
      $region23: #{darknet_residual_block.1} parent=11 // pred_region
        _
      $region24: #{darknet_residual_block.1} parent=11 // pred_fallthru
        _
      // Predicated region
      $region25: #{darknet_residual_block.1} parent=11 // pred_check
        %p259 = pneg %p125
      $region26: #{darknet_residual_block.1} parent=11 // pred_check_branch
        %261 = sbr.rel (%p259) target = $region28
      $region27: #{darknet_residual_block.1} parent=11 // pred_region
        _
      $region28: #{darknet_residual_block.1} parent=11 // pred_fallthru
        _
      // Predicated region
      $region29: #{darknet_residual_block.1} parent=11 // pred_check
        %p262 = pneg %p146
      $region30: #{darknet_residual_block.1} parent=11 // pred_check_branch
        %264 = sbr.rel (%p262) target = $region32
      $region31: #{darknet_residual_block.1} parent=11 // pred_region
        _
      $region32: #{darknet_residual_block.1} parent=11 // pred_fallthru
        _
      // Predicated region
      $region33: #{darknet_residual_block.1} parent=11 // pred_check
        %p265 = pneg %p167
      $region34: #{darknet_residual_block.1} parent=11 // pred_check_branch
        %267 = sbr.rel (%p265) target = $region36
      $region35: #{darknet_residual_block.1} parent=11 // pred_region
        _
      $region36: #{darknet_residual_block.1} parent=11 // pred_fallthru
        _
      // Predicated region
      $region37: #{darknet_residual_block.1} parent=11 // pred_check
        %p268 = pneg %p188
      $region38: #{darknet_residual_block.1} parent=11 // pred_check_branch
        %270 = sbr.rel (%p268) target = $region40
      $region39: #{darknet_residual_block.1} parent=11 // pred_region
        _
      $region40: #{darknet_residual_block.1} parent=11 // pred_fallthru
        _
      // Predicated region
      $region41: #{darknet_residual_block.1} parent=11 // pred_check
        %p271 = pneg %p209
      $region42: #{darknet_residual_block.1} parent=11 // pred_check_branch
        %273 = sbr.rel (%p271) target = $region44
      $region43: #{darknet_residual_block.1} parent=11 // pred_region
        _
      $region44: #{darknet_residual_block.1} parent=11 // pred_fallthru
        _
    $region12: #{darknet_residual_block.1} parent=5 // pred_fallthru
      _
    %p274 = scmp.lt.s32.totalorder %s15, 2
    // Predicated region
    $region45: #{darknet_residual_block.1} parent=5 // pred_check
      %p275 = pneg %p274
    $region46: #{darknet_residual_block.1} parent=5 // pred_check_branch
      %277 = sbr.rel (%p275) target = $region48
    $region47: #{darknet_residual_block.1} parent=5 // pred_region
      // Predicated region
      $region49: #{darknet_residual_block.1} parent=47 // pred_check
        %p278 = pneg %p35
      $region50: #{darknet_residual_block.1} parent=47 // pred_check_branch
        %280 = sbr.rel (%p278) target = $region52
      $region51: #{darknet_residual_block.1} parent=47 // pred_region
        %s281 = smul.u32 2, %s15
        %p282 = scmp.lt.s32.totalorder %s281, 3
        %s283 = scalar_select %p282, %s281, 3
        %s284 = smul.addr %s283, 8
        %s285 = scalar_lea.vmem %s0, %s284
        %s286 = smul.u32 2, %s15
      $region52: #{darknet_residual_block.1} parent=47 // pred_fallthru
        _
    $region48: #{darknet_residual_block.1} parent=5 // pred_fallthru
      _
    %p287 = scmp.le.s32.totalorder 1, %s15
    %p288 = scmp.lt.s32.totalorder %s15, 3
    %p289 = pnand %p287, %p288
    %p290 = pneg %p289
    // Predicated region
    $region53: #{darknet_residual_block.1} parent=5 // pred_check
      _
    $region54: #{darknet_residual_block.1} parent=5 // pred_check_branch
      %292 = sbr.rel (%p289) target = $region56
    $region55: #{darknet_residual_block.1} parent=5 // pred_region
      %s293 = ssub.s32 %s15, 1
      %s294 = smul.u32 2, %s20
      %p295 = scmp.lt.s32.totalorder %s294, 3
      %s296 = scalar_select %p295, %s294, 3
      %s297 = smul.addr %s296, 8
      %s298 = scalar_lea.vmem %s0, %s297
      %p299 = pneg %p41
      %p300 = pneg %p38
      %p301 = pneg %p62
      %p302 = pneg %p59
      %p303 = pneg %p83
      %p304 = pneg %p80
      %p305 = pneg %p104
      %p306 = pneg %p101
      %p307 = pneg %p125
      %p308 = pneg %p122
      %p309 = pneg %p146
      %p310 = pneg %p143
      %p311 = pneg %p167
      %p312 = pneg %p164
      %p313 = pneg %p188
      %p314 = pneg %p185
      %p315 = pneg %p209
      %p316 = pneg %p206
      %p317 = pneg %p235
      %p318 = pneg %p232
      %s319 = smul.u32 2, %s20
      %p320 = scmp.lt.s32.totalorder %s319, 3
      %s321 = scalar_select %p320, %s319, 3
      %s322 = smul.addr %s321, 8
      %s323 = scalar_lea.vmem %s9, %s322
      %s324 = smul.u32 2, %s20
      %p325 = scmp.lt.s32.totalorder %s324, 3
      %s326 = scalar_select %p325, %s324, 3
      %s327 = smul.addr %s326, 8
      %s328 = scalar_lea.vmem %s0, %s327
      %s329 = smul.u32 2, %s20
      %s330 = smul.u32 2, %s20
      %p331 = scmp.lt.s32.totalorder %s330, 3
      %s332 = scalar_select %p331, %s330, 3
      %s333 = smul.addr %s332, 8
      %s334 = scalar_lea.vmem %s9, %s333
      %s335 = smul.u32 2, %s20
      %v336 = vld [vmem:[%s328] sm:$0xff]
      %v337 = vld [vmem:[%s328 + $0x8] sm:$0xff]
      %v338 = vlaneseq
      %v339 = vshrl.u32 %v338, 7
      %v340 = vadd.s32 %v339, 8
      %v341 = vlaneseq
      %v342 = vand.u32 %v341, 127
      %v343 = vadd.s32 %v342, 1
      %vm344 = vcmp.eq.s32.totalorder %v339, %v343
      %vm345 = vcmp.eq.s32.totalorder %v340, %v343
      %v346 = vsel %vm344, 1, 0
      %v347 = vsel %vm345, 1, 0
      %v348 = vcvt.s32.f32 %v346
      %v349 = vcvt.s32.f32 %v347
      %v350 = vadd.s32 %v339, 1
      %v351 = vadd.s32 %v340, 1
      %vm352 = vcmp.eq.s32.totalorder %v350, %v342
      %vm353 = vcmp.eq.s32.totalorder %v351, %v342
      %v354 = vsel %vm352, 1, 0
      %v355 = vsel %vm353, 1, 0
      %v356 = vcvt.s32.f32 %v354
      %v357 = vcvt.s32.f32 %v355
      %v358 = vld [vmem:[%s1] sm:$0xff]
      %v359 = vld [vmem:[%s1 + $0x8] sm:$0xff]
      %v360 = vld [vmem:[%s1 + $0x10] sm:$0xff]
      %v361 = vld [vmem:[%s1 + $0x18] sm:$0xff]
      %v362 = vld [vmem:[%s1 + $0x20] sm:$0xff]
      %v363 = vld [vmem:[%s1 + $0x28] sm:$0xff]
      %v364 = vld [vmem:[%s1 + $0x30] sm:$0xff]
      %v365 = vld [vmem:[%s1 + $0x38] sm:$0xff]
      %v366 = vld [vmem:[%s2] sm:$0x1]
      %v368 = vlaneseq
      %v369 = vshrl.u32 %v368, 7
      %v370 = vsub.s32 0, %v369
      %v371 = vrot.slane %v366, %v370
      %vm373 = vcmask 523264
      %v375 = vsel %vm373, %v336, 0
      %v378 = vsel %vm373, %v337, 0
      %380 = vmatprep.subr.mxu0 0.0
      %381 = vmatpush1.msra.mxu0 %v358
      %382 = vmatprep.subr.mxu0 0.0
      %383 = vmatpush1.msra.mxu0 %v359
      %384 = vmatprep.subr.mxu0 0.0
      %385 = vmatpush1.msra.mxu0 %v360
      %386 = vmatprep.subr.mxu0 0.0
      %387 = vmatpush1.msra.mxu0 %v361
      %388 = vmatprep.subr.mxu0 0.0
      %389 = vmatpush1.msra.mxu0 %v362
      %390 = vmatprep.subr.mxu0 0.0
      %391 = vmatpush1.msra.mxu0 %v363
      %392 = vmatprep.subr.mxu0 0.0
      %393 = vmatpush1.msra.mxu0 %v364
      %394 = vmatprep.subr.mxu0 0.0
      %395 = vmatpush1.msra.mxu0 %v365
      %396 = vmatprep.subr.mxu0 0.0
      %397 = vmatpush1.msra.mxu0 0.0
      %398 = vmatprep.subr.mxu0 0.0
      %399 = vmatpush1.msra.mxu0 0.0
      %400 = vmatprep.subr.mxu0 0.0
      %401 = vmatpush1.msra.mxu0 0.0
      %402 = vmatprep.subr.mxu0 0.0
      %403 = vmatpush1.msra.mxu0 0.0
      %404 = vmatprep.subr.mxu0 0.0
      %405 = vmatpush1.msra.mxu0 0.0
      %406 = vmatprep.subr.mxu0 0.0
      %407 = vmatpush1.msra.mxu0 0.0
      %408 = vmatprep.subr.mxu0 0.0
      %409 = vmatpush1.msra.mxu0 0.0
      %410 = vmatprep.subr.mxu0 0.0
      %411 = vmatpush1.msra.mxu0 0.0
      %412 = vmatprep.subr.mxu0 0.0
      %413 = vmatpush1.msra.mxu0 0.0
      %414 = vmatprep.subr.mxu0 0.0
      %415 = vmatpush1.msra.mxu0 0.0
      %416 = vmatprep.subr.mxu0 0.0
      %417 = vmatpush1.msra.mxu0 0.0
      %418 = vmatprep.subr.mxu0 0.0
      %419 = vmatpush1.msra.mxu0 0.0
      %420 = vmatprep.subr.mxu0 0.0
      %421 = vmatpush1.msra.mxu0 0.0
      %422 = vmatprep.subr.mxu0 0.0
      %423 = vmatpush1.msra.mxu0 0.0
      %424 = vmatprep.subr.mxu0 0.0
      %425 = vmatpush1.msra.mxu0 0.0
      %426 = vmatprep.subr.mxu0 0.0
      %427 = vmatpush1.msra.mxu0 0.0
      %428 = vmatprep.subr.mxu0 0.0
      %429 = vmatpush1.msra.mxu0 0.0
      %430 = vmatprep.subr.mxu0 0.0
      %431 = vmatpush1.msra.mxu0 0.0
      %432 = vmatprep.subr.mxu0 0.0
      %433 = vmatpush1.msra.mxu0 0.0
      %434 = vmatprep.subr.mxu0 0.0
      %435 = vmatpush1.msra.mxu0 0.0
      %436 = vmatprep.subr.mxu0 0.0
      %437 = vmatpush1.msra.mxu0 0.0
      %438 = vmatprep.subr.mxu0 0.0
      %439 = vmatpush1.msra.mxu0 0.0
      %440 = vmatprep.subr.mxu0 0.0
      %441 = vmatpush1.msra.mxu0 0.0
      %442 = vmatprep.subr.mxu0 0.0
      %443 = vmatpush1.msra.mxu0 0.0
      %444 = vmatprep.mubr.f32.mxu0 0.0
      %445 = vmatmul.mubr.f32.gmra.mrb[0].mxu0 %v375
      %v446 = vpop.f32.mrb[0].mxu0
      %v447 = vadd.f32 %v371, %v446
      %v448 = vpop.f32.mrb[0].mxu0
      %449 = vmatprep.mubr.f32.mxu0 0.0
      %450 = vmatmul.mubr.f32.gmra.mrb[0].mxu0 %v378
      %v451 = vpop.f32.mrb[0].mxu0
      %v452 = vadd.f32 %v371, %v451
      %v453 = vpop.f32.mrb[0].mxu0
      %454 = vdwg.mxu0
      %vm455 = vcmp.gt.f32.partialorder %v447, 0.0
      %vm456 = vcmp.gt.f32.partialorder %v452, 0.0
      %v457 = vmul.f32 %v447, 0.01
      %v458 = vmul.f32 %v452, 0.01
      %v459 = vsel %vm455, %v447, %v457
      %v460 = vsel %vm456, %v452, %v458
      %vm461 = vcmask 130048
      %v463 = vsel %vm461, %v348, 0
      %v466 = vsel %vm461, %v349, 0
      %468 = vmatprep.subr.mxu0 0.0
      %469 = vmatpush1.msra.mxu0 %v459
      %470 = vmatprep.subr.mxu0 0.0
      %471 = vmatpush1.msra.mxu0 %v460
      %472 = vmatprep.subr.mxu0 0.0
      %473 = vmatpush1.msra.mxu0 0.0
      %474 = vmatprep.subr.mxu0 0.0
      %475 = vmatpush1.msra.mxu0 0.0
      %476 = vmatprep.subr.mxu0 0.0
      %477 = vmatpush1.msra.mxu0 0.0
      %478 = vmatprep.subr.mxu0 0.0
      %479 = vmatpush1.msra.mxu0 0.0
      %480 = vmatprep.subr.mxu0 0.0
      %481 = vmatpush1.msra.mxu0 0.0
      %482 = vmatprep.subr.mxu0 0.0
      %483 = vmatpush1.msra.mxu0 0.0
      %484 = vmatprep.subr.mxu0 0.0
      %485 = vmatpush1.msra.mxu0 0.0
      %486 = vmatprep.subr.mxu0 0.0
      %487 = vmatpush1.msra.mxu0 0.0
      %488 = vmatprep.subr.mxu0 0.0
      %489 = vmatpush1.msra.mxu0 0.0
      %490 = vmatprep.subr.mxu0 0.0
      %491 = vmatpush1.msra.mxu0 0.0
      %492 = vmatprep.subr.mxu0 0.0
      %493 = vmatpush1.msra.mxu0 0.0
      %494 = vmatprep.subr.mxu0 0.0
      %495 = vmatpush1.msra.mxu0 0.0
      %496 = vmatprep.subr.mxu0 0.0
      %497 = vmatpush1.msra.mxu0 0.0
      %498 = vmatprep.subr.mxu0 0.0
      %499 = vmatpush1.msra.mxu0 0.0
      %500 = vmatprep.subr.mxu0 0.0
      %501 = vmatpush1.msra.mxu0 0.0
      %502 = vmatprep.subr.mxu0 0.0
      %503 = vmatpush1.msra.mxu0 0.0
      %504 = vmatprep.subr.mxu0 0.0
      %505 = vmatpush1.msra.mxu0 0.0
      %506 = vmatprep.subr.mxu0 0.0
      %507 = vmatpush1.msra.mxu0 0.0
      %508 = vmatprep.subr.mxu0 0.0
      %509 = vmatpush1.msra.mxu0 0.0
      %510 = vmatprep.subr.mxu0 0.0
      %511 = vmatpush1.msra.mxu0 0.0
      %512 = vmatprep.subr.mxu0 0.0
      %513 = vmatpush1.msra.mxu0 0.0
      %514 = vmatprep.subr.mxu0 0.0
      %515 = vmatpush1.msra.mxu0 0.0
      %516 = vmatprep.subr.mxu0 0.0
      %517 = vmatpush1.msra.mxu0 0.0
      %518 = vmatprep.subr.mxu0 0.0
      %519 = vmatpush1.msra.mxu0 0.0
      %520 = vmatprep.subr.mxu0 0.0
      %521 = vmatpush1.msra.mxu0 0.0
      %522 = vmatprep.subr.mxu0 0.0
      %523 = vmatpush1.msra.mxu0 0.0
      %524 = vmatprep.subr.mxu0 0.0
      %525 = vmatpush1.msra.mxu0 0.0
      %526 = vmatprep.subr.mxu0 0.0
      %527 = vmatpush1.msra.mxu0 0.0
      %528 = vmatprep.subr.mxu0 0.0
      %529 = vmatpush1.msra.mxu0 0.0
      %530 = vmatprep.subr.mxu0 0.0
      %531 = vmatpush1.msra.mxu0 0.0
      %532 = vmatprep.mubr.f32.mxu0 0.0
      %533 = vmatmul.mubr.f32.gmra.mrb[0].mxu0 %v463
      %v534 = vpop.f32.mrb[0].mxu0
      %v535 = vadd.f32 0.0, %v534
      %v536 = vpop.f32.mrb[0].mxu0
      %537 = vmatprep.mubr.f32.mxu0 0.0
      %538 = vmatmul.mubr.f32.gmra.mrb[0].mxu0 %v466
      %v539 = vpop.f32.mrb[0].mxu0
      %v540 = vadd.f32 0.0, %v539
      %v541 = vpop.f32.mrb[0].mxu0
      %542 = vdwg.mxu0
      %v544 = vsel %vm461, %v356, 0
      %v547 = vsel %vm461, %v357, 0
      %549 = vmatprep.subr.mxu0 0.0
      %550 = vmatpush1.msra.mxu0 %v459
      %551 = vmatprep.subr.mxu0 0.0
      %552 = vmatpush1.msra.mxu0 %v460
      %553 = vmatprep.subr.mxu0 0.0
      %554 = vmatpush1.msra.mxu0 0.0
      %555 = vmatprep.subr.mxu0 0.0
      %556 = vmatpush1.msra.mxu0 0.0
      %557 = vmatprep.subr.mxu0 0.0
      %558 = vmatpush1.msra.mxu0 0.0
      %559 = vmatprep.subr.mxu0 0.0
      %560 = vmatpush1.msra.mxu0 0.0
      %561 = vmatprep.subr.mxu0 0.0
      %562 = vmatpush1.msra.mxu0 0.0
      %563 = vmatprep.subr.mxu0 0.0
      %564 = vmatpush1.msra.mxu0 0.0
      %565 = vmatprep.subr.mxu0 0.0
      %566 = vmatpush1.msra.mxu0 0.0
      %567 = vmatprep.subr.mxu0 0.0
      %568 = vmatpush1.msra.mxu0 0.0
      %569 = vmatprep.subr.mxu0 0.0
      %570 = vmatpush1.msra.mxu0 0.0
      %571 = vmatprep.subr.mxu0 0.0
      %572 = vmatpush1.msra.mxu0 0.0
      %573 = vmatprep.subr.mxu0 0.0
      %574 = vmatpush1.msra.mxu0 0.0
      %575 = vmatprep.subr.mxu0 0.0
      %576 = vmatpush1.msra.mxu0 0.0
      %577 = vmatprep.subr.mxu0 0.0
      %578 = vmatpush1.msra.mxu0 0.0
      %579 = vmatprep.subr.mxu0 0.0
      %580 = vmatpush1.msra.mxu0 0.0
      %581 = vmatprep.subr.mxu0 0.0
      %582 = vmatpush1.msra.mxu0 0.0
      %583 = vmatprep.subr.mxu0 0.0
      %584 = vmatpush1.msra.mxu0 0.0
      %585 = vmatprep.subr.mxu0 0.0
      %586 = vmatpush1.msra.mxu0 0.0
      %587 = vmatprep.subr.mxu0 0.0
      %588 = vmatpush1.msra.mxu0 0.0
      %589 = vmatprep.subr.mxu0 0.0
      %590 = vmatpush1.msra.mxu0 0.0
      %591 = vmatprep.subr.mxu0 0.0
      %592 = vmatpush1.msra.mxu0 0.0
      %593 = vmatprep.subr.mxu0 0.0
      %594 = vmatpush1.msra.mxu0 0.0
      %595 = vmatprep.subr.mxu0 0.0
      %596 = vmatpush1.msra.mxu0 0.0
      %597 = vmatprep.subr.mxu0 0.0
      %598 = vmatpush1.msra.mxu0 0.0
      %599 = vmatprep.subr.mxu0 0.0
      %600 = vmatpush1.msra.mxu0 0.0
      %601 = vmatprep.subr.mxu0 0.0
      %602 = vmatpush1.msra.mxu0 0.0
      %603 = vmatprep.subr.mxu0 0.0
      %604 = vmatpush1.msra.mxu0 0.0
      %605 = vmatprep.subr.mxu0 0.0
      %606 = vmatpush1.msra.mxu0 0.0
      %607 = vmatprep.subr.mxu0 0.0
      %608 = vmatpush1.msra.mxu0 0.0
      %609 = vmatprep.subr.mxu0 0.0
      %610 = vmatpush1.msra.mxu0 0.0
      %611 = vmatprep.subr.mxu0 0.0
      %612 = vmatpush1.msra.mxu0 0.0
      %613 = vmatprep.mubr.f32.mxu0 0.0
      %614 = vmatmul.mubr.f32.gmra.mrb[0].mxu0 %v544
      %v615 = vpop.f32.mrb[0].mxu0
      %v616 = vadd.f32 0.0, %v615
      %v617 = vpop.f32.mrb[0].mxu0
      %618 = vmatprep.mubr.f32.mxu0 0.0
      %619 = vmatmul.mubr.f32.gmra.mrb[0].mxu0 %v547
      %v620 = vpop.f32.mrb[0].mxu0
      %v621 = vadd.f32 0.0, %v620
      %v622 = vpop.f32.mrb[0].mxu0
      %623 = vdwg.mxu0
      %s624 = scalar_lea.vmem %s3, 32
      %v625 = vld [vmem:[%s624] sm:$0xff]
      %v626 = vld [vmem:[%s624 + $0x8] sm:$0xff]
      %v627 = vld [vmem:[%s624 + $0x10] sm:$0xff]
      %v628 = vld [vmem:[%s624 + $0x18] sm:$0xff]
      %v629 = vld [vmem:[%s3] sm:$0xff]
      %v630 = vld [vmem:[%s3 + $0x8] sm:$0xff]
      %v631 = vld [vmem:[%s3 + $0x10] sm:$0xff]
      %v632 = vld [vmem:[%s3 + $0x18] sm:$0xff]
      %vm633 = vcmask 261120
      %v635 = vsel %vm633, %v535, 0
      %v638 = vsel %vm633, %v540, 0
      %640 = vmatprep.subr.mxu0 0.0
      %641 = vmatpush1.msra.mxu0 %v629
      %642 = vmatprep.subr.mxu0 0.0
      %643 = vmatpush1.msra.mxu0 %v630
      %644 = vmatprep.subr.mxu0 0.0
      %645 = vmatpush1.msra.mxu0 %v631
      %646 = vmatprep.subr.mxu0 0.0
      %647 = vmatpush1.msra.mxu0 %v632
      %648 = vmatprep.subr.mxu0 0.0
      %649 = vmatpush1.msra.mxu0 0.0
      %650 = vmatprep.subr.mxu0 0.0
      %651 = vmatpush1.msra.mxu0 0.0
      %652 = vmatprep.subr.mxu0 0.0
      %653 = vmatpush1.msra.mxu0 0.0
      %654 = vmatprep.subr.mxu0 0.0
      %655 = vmatpush1.msra.mxu0 0.0
      %656 = vmatprep.subr.mxu0 0.0
      %657 = vmatpush1.msra.mxu0 0.0
      %658 = vmatprep.subr.mxu0 0.0
      %659 = vmatpush1.msra.mxu0 0.0
      %660 = vmatprep.subr.mxu0 0.0
      %661 = vmatpush1.msra.mxu0 0.0
      %662 = vmatprep.subr.mxu0 0.0
      %663 = vmatpush1.msra.mxu0 0.0
      %664 = vmatprep.subr.mxu0 0.0
      %665 = vmatpush1.msra.mxu0 0.0
      %666 = vmatprep.subr.mxu0 0.0
      %667 = vmatpush1.msra.mxu0 0.0
      %668 = vmatprep.subr.mxu0 0.0
      %669 = vmatpush1.msra.mxu0 0.0
      %670 = vmatprep.subr.mxu0 0.0
      %671 = vmatpush1.msra.mxu0 0.0
      %672 = vmatprep.subr.mxu0 0.0
      %673 = vmatpush1.msra.mxu0 0.0
      %674 = vmatprep.subr.mxu0 0.0
      %675 = vmatpush1.msra.mxu0 0.0
      %676 = vmatprep.subr.mxu0 0.0
      %677 = vmatpush1.msra.mxu0 0.0
      %678 = vmatprep.subr.mxu0 0.0
      %679 = vmatpush1.msra.mxu0 0.0
      %680 = vmatprep.subr.mxu0 0.0
      %681 = vmatpush1.msra.mxu0 0.0
      %682 = vmatprep.subr.mxu0 0.0
      %683 = vmatpush1.msra.mxu0 0.0
      %684 = vmatprep.subr.mxu0 0.0
      %685 = vmatpush1.msra.mxu0 0.0
      %686 = vmatprep.subr.mxu0 0.0
      %687 = vmatpush1.msra.mxu0 0.0
      %688 = vmatprep.subr.mxu0 0.0
      %689 = vmatpush1.msra.mxu0 0.0
      %690 = vmatprep.subr.mxu0 0.0
      %691 = vmatpush1.msra.mxu0 0.0
      %692 = vmatprep.subr.mxu0 0.0
      %693 = vmatpush1.msra.mxu0 0.0
      %694 = vmatprep.subr.mxu0 0.0
      %695 = vmatpush1.msra.mxu0 0.0
      %696 = vmatprep.subr.mxu0 0.0
      %697 = vmatpush1.msra.mxu0 0.0
      %698 = vmatprep.subr.mxu0 0.0
      %699 = vmatpush1.msra.mxu0 0.0
      %700 = vmatprep.subr.mxu0 0.0
      %701 = vmatpush1.msra.mxu0 0.0
      %702 = vmatprep.subr.mxu0 0.0
      %703 = vmatpush1.msra.mxu0 0.0
      %704 = vmatprep.mubr.f32.mxu0 0.0
      %705 = vmatmul.mubr.f32.gmra.mrb[0].mxu0 %v635
      %v706 = vpop.f32.mrb[0].mxu0
      %v707 = vadd.f32 0.0, %v706
      %v708 = vpop.f32.mrb[0].mxu0
      %709 = vmatprep.mubr.f32.mxu0 0.0
      %710 = vmatmul.mubr.f32.gmra.mrb[0].mxu0 %v638
      %v711 = vpop.f32.mrb[0].mxu0
      %v712 = vadd.f32 0.0, %v711
      %v713 = vpop.f32.mrb[0].mxu0
      %714 = vdwg.mxu0
      %v716 = vsel %vm633, %v459, 0
      %v719 = vsel %vm633, %v460, 0
      %721 = vmatprep.subr.mxu0 0.0
      %722 = vmatpush1.msra.mxu0 %v625
      %723 = vmatprep.subr.mxu0 0.0
      %724 = vmatpush1.msra.mxu0 %v626
      %725 = vmatprep.subr.mxu0 0.0
      %726 = vmatpush1.msra.mxu0 %v627
      %727 = vmatprep.subr.mxu0 0.0
      %728 = vmatpush1.msra.mxu0 %v628
      %729 = vmatprep.subr.mxu0 0.0
      %730 = vmatpush1.msra.mxu0 0.0
      %731 = vmatprep.subr.mxu0 0.0
      %732 = vmatpush1.msra.mxu0 0.0
      %733 = vmatprep.subr.mxu0 0.0
      %734 = vmatpush1.msra.mxu0 0.0
      %735 = vmatprep.subr.mxu0 0.0
      %736 = vmatpush1.msra.mxu0 0.0
      %737 = vmatprep.subr.mxu0 0.0
      %738 = vmatpush1.msra.mxu0 0.0
      %739 = vmatprep.subr.mxu0 0.0
      %740 = vmatpush1.msra.mxu0 0.0
      %741 = vmatprep.subr.mxu0 0.0
      %742 = vmatpush1.msra.mxu0 0.0
      %743 = vmatprep.subr.mxu0 0.0
      %744 = vmatpush1.msra.mxu0 0.0
      %745 = vmatprep.subr.mxu0 0.0
      %746 = vmatpush1.msra.mxu0 0.0
      %747 = vmatprep.subr.mxu0 0.0
      %748 = vmatpush1.msra.mxu0 0.0
      %749 = vmatprep.subr.mxu0 0.0
      %750 = vmatpush1.msra.mxu0 0.0
      %751 = vmatprep.subr.mxu0 0.0
      %752 = vmatpush1.msra.mxu0 0.0
      %753 = vmatprep.subr.mxu0 0.0
      %754 = vmatpush1.msra.mxu0 0.0
      %755 = vmatprep.subr.mxu0 0.0
      %756 = vmatpush1.msra.mxu0 0.0
      %757 = vmatprep.subr.mxu0 0.0
      %758 = vmatpush1.msra.mxu0 0.0
      %759 = vmatprep.subr.mxu0 0.0
      %760 = vmatpush1.msra.mxu0 0.0
      %761 = vmatprep.subr.mxu0 0.0
      %762 = vmatpush1.msra.mxu0 0.0
      %763 = vmatprep.subr.mxu0 0.0
      %764 = vmatpush1.msra.mxu0 0.0
      %765 = vmatprep.subr.mxu0 0.0
      %766 = vmatpush1.msra.mxu0 0.0
      %767 = vmatprep.subr.mxu0 0.0
      %768 = vmatpush1.msra.mxu0 0.0
      %769 = vmatprep.subr.mxu0 0.0
      %770 = vmatpush1.msra.mxu0 0.0
      %771 = vmatprep.subr.mxu0 0.0
      %772 = vmatpush1.msra.mxu0 0.0
      %773 = vmatprep.subr.mxu0 0.0
      %774 = vmatpush1.msra.mxu0 0.0
      %775 = vmatprep.subr.mxu0 0.0
      %776 = vmatpush1.msra.mxu0 0.0
      %777 = vmatprep.subr.mxu0 0.0
      %778 = vmatpush1.msra.mxu0 0.0
      %779 = vmatprep.subr.mxu0 0.0
      %780 = vmatpush1.msra.mxu0 0.0
      %781 = vmatprep.subr.mxu0 0.0
      %782 = vmatpush1.msra.mxu0 0.0
      %783 = vmatprep.subr.mxu0 0.0
      %784 = vmatpush1.msra.mxu0 0.0
      %785 = vmatprep.mubr.f32.mxu0 0.0
      %786 = vmatmul.mubr.f32.gmra.mrb[0].mxu0 %v716
      %v787 = vpop.f32.mrb[0].mxu0
      %v788 = vadd.f32 %v707, %v787
      %v789 = vpop.f32.mrb[0].mxu0
      %790 = vmatprep.mubr.f32.mxu0 0.0
      %791 = vmatmul.mubr.f32.gmra.mrb[0].mxu0 %v719
      %v792 = vpop.f32.mrb[0].mxu0
      %v793 = vadd.f32 %v712, %v792
      %v794 = vpop.f32.mrb[0].mxu0
      %795 = vdwg.mxu0
      %s796 = scalar_lea.vmem %s3, 64
      %v797 = vld [vmem:[%s796] sm:$0xff]
      %v798 = vld [vmem:[%s796 + $0x8] sm:$0xff]
      %v799 = vld [vmem:[%s796 + $0x10] sm:$0xff]
      %v800 = vld [vmem:[%s796 + $0x18] sm:$0xff]
      %v802 = vsel %vm633, %v616, 0
      %v805 = vsel %vm633, %v621, 0
      %807 = vmatprep.subr.mxu0 0.0
      %808 = vmatpush1.msra.mxu0 %v797
      %809 = vmatprep.subr.mxu0 0.0
      %810 = vmatpush1.msra.mxu0 %v798
      %811 = vmatprep.subr.mxu0 0.0
      %812 = vmatpush1.msra.mxu0 %v799
      %813 = vmatprep.subr.mxu0 0.0
      %814 = vmatpush1.msra.mxu0 %v800
      %815 = vmatprep.subr.mxu0 0.0
      %816 = vmatpush1.msra.mxu0 0.0
      %817 = vmatprep.subr.mxu0 0.0
      %818 = vmatpush1.msra.mxu0 0.0
      %819 = vmatprep.subr.mxu0 0.0
      %820 = vmatpush1.msra.mxu0 0.0
      %821 = vmatprep.subr.mxu0 0.0
      %822 = vmatpush1.msra.mxu0 0.0
      %823 = vmatprep.subr.mxu0 0.0
      %824 = vmatpush1.msra.mxu0 0.0
      %825 = vmatprep.subr.mxu0 0.0
      %826 = vmatpush1.msra.mxu0 0.0
      %827 = vmatprep.subr.mxu0 0.0
      %828 = vmatpush1.msra.mxu0 0.0
      %829 = vmatprep.subr.mxu0 0.0
      %830 = vmatpush1.msra.mxu0 0.0
      %831 = vmatprep.subr.mxu0 0.0
      %832 = vmatpush1.msra.mxu0 0.0
      %833 = vmatprep.subr.mxu0 0.0
      %834 = vmatpush1.msra.mxu0 0.0
      %835 = vmatprep.subr.mxu0 0.0
      %836 = vmatpush1.msra.mxu0 0.0
      %837 = vmatprep.subr.mxu0 0.0
      %838 = vmatpush1.msra.mxu0 0.0
      %839 = vmatprep.subr.mxu0 0.0
      %840 = vmatpush1.msra.mxu0 0.0
      %841 = vmatprep.subr.mxu0 0.0
      %842 = vmatpush1.msra.mxu0 0.0
      %843 = vmatprep.subr.mxu0 0.0
      %844 = vmatpush1.msra.mxu0 0.0
      %845 = vmatprep.subr.mxu0 0.0
      %846 = vmatpush1.msra.mxu0 0.0
      %847 = vmatprep.subr.mxu0 0.0
      %848 = vmatpush1.msra.mxu0 0.0
      %849 = vmatprep.subr.mxu0 0.0
      %850 = vmatpush1.msra.mxu0 0.0
      %851 = vmatprep.subr.mxu0 0.0
      %852 = vmatpush1.msra.mxu0 0.0
      %853 = vmatprep.subr.mxu0 0.0
      %854 = vmatpush1.msra.mxu0 0.0
      %855 = vmatprep.subr.mxu0 0.0
      %856 = vmatpush1.msra.mxu0 0.0
      %857 = vmatprep.subr.mxu0 0.0
      %858 = vmatpush1.msra.mxu0 0.0
      %859 = vmatprep.subr.mxu0 0.0
      %860 = vmatpush1.msra.mxu0 0.0
      %861 = vmatprep.subr.mxu0 0.0
      %862 = vmatpush1.msra.mxu0 0.0
      %863 = vmatprep.subr.mxu0 0.0
      %864 = vmatpush1.msra.mxu0 0.0
      %865 = vmatprep.subr.mxu0 0.0
      %866 = vmatpush1.msra.mxu0 0.0
      %867 = vmatprep.subr.mxu0 0.0
      %868 = vmatpush1.msra.mxu0 0.0
      %869 = vmatprep.subr.mxu0 0.0
      %870 = vmatpush1.msra.mxu0 0.0
      %871 = vmatprep.mubr.f32.mxu0 0.0
      %872 = vmatmul.mubr.f32.gmra.mrb[0].mxu0 %v802
      %v873 = vpop.f32.mrb[0].mxu0
      %v874 = vadd.f32 0.0, %v873
      %v875 = vpop.f32.mrb[0].mxu0
      %876 = vmatprep.mubr.f32.mxu0 0.0
      %877 = vmatmul.mubr.f32.gmra.mrb[0].mxu0 %v805
      %v878 = vpop.f32.mrb[0].mxu0
      %v879 = vadd.f32 0.0, %v878
      %v880 = vpop.f32.mrb[0].mxu0
      %881 = vdwg.mxu0
      %v882 = vadd.f32 %v788, %v874
      %v883 = vadd.f32 %v793, %v879
      %v884 = vld [vmem:[%s4] sm:$0x1]
      %v886 = vlaneseq
      %v887 = vshrl.u32 %v886, 7
      %v888 = vsub.s32 0, %v887
      %v889 = vrot.slane %v884, %v888
      %v891 = vadd.f32 %v882, %v889
      %v892 = vadd.f32 %v883, %v889
      %vm893 = vcmp.gt.f32.partialorder %v891, 0.0
      %vm894 = vcmp.gt.f32.partialorder %v892, 0.0
      %v895 = vmul.f32 %v891, 0.01
      %v896 = vmul.f32 %v892, 0.01
      %v897 = vsel %vm893, %v891, %v895
      %v898 = vsel %vm894, %v892, %v896
      %v899 = vld [vmem:[%s5] sm:$0xff]
      %v900 = vld [vmem:[%s5 + $0x8] sm:$0xff]
      %v901 = vld [vmem:[%s5 + $0x10] sm:$0xff]
      %v902 = vld [vmem:[%s5 + $0x18] sm:$0xff]
      %v903 = vld [vmem:[%s5 + $0x20] sm:$0xff]
      %v904 = vld [vmem:[%s5 + $0x28] sm:$0xff]
      %v905 = vld [vmem:[%s5 + $0x30] sm:$0xff]
      %v906 = vld [vmem:[%s5 + $0x38] sm:$0xff]
      %v907 = vld [vmem:[%s6] sm:$0x1]
      %v909 = vlaneseq
      %v910 = vshrl.u32 %v909, 7
      %v911 = vsub.s32 0, %v910
      %v912 = vrot.slane %v907, %v911
      %v915 = vsel %vm373, %v897, 0
      %v918 = vsel %vm373, %v898, 0
      %920 = vmatprep.subr.mxu0 0.0
      %921 = vmatpush1.msra.mxu0 %v899
      %922 = vmatprep.subr.mxu0 0.0
      %923 = vmatpush1.msra.mxu0 %v900
      %924 = vmatprep.subr.mxu0 0.0
      %925 = vmatpush1.msra.mxu0 %v901
      %926 = vmatprep.subr.mxu0 0.0
      %927 = vmatpush1.msra.mxu0 %v902
      %928 = vmatprep.subr.mxu0 0.0
      %929 = vmatpush1.msra.mxu0 %v903
      %930 = vmatprep.subr.mxu0 0.0
      %931 = vmatpush1.msra.mxu0 %v904
      %932 = vmatprep.subr.mxu0 0.0
      %933 = vmatpush1.msra.mxu0 %v905
      %934 = vmatprep.subr.mxu0 0.0
      %935 = vmatpush1.msra.mxu0 %v906
      %936 = vmatprep.subr.mxu0 0.0
      %937 = vmatpush1.msra.mxu0 0.0
      %938 = vmatprep.subr.mxu0 0.0
      %939 = vmatpush1.msra.mxu0 0.0
      %940 = vmatprep.subr.mxu0 0.0
      %941 = vmatpush1.msra.mxu0 0.0
      %942 = vmatprep.subr.mxu0 0.0
      %943 = vmatpush1.msra.mxu0 0.0
      %944 = vmatprep.subr.mxu0 0.0
      %945 = vmatpush1.msra.mxu0 0.0
      %946 = vmatprep.subr.mxu0 0.0
      %947 = vmatpush1.msra.mxu0 0.0
      %948 = vmatprep.subr.mxu0 0.0
      %949 = vmatpush1.msra.mxu0 0.0
      %950 = vmatprep.subr.mxu0 0.0
      %951 = vmatpush1.msra.mxu0 0.0
      %952 = vmatprep.subr.mxu0 0.0
      %953 = vmatpush1.msra.mxu0 0.0
      %954 = vmatprep.subr.mxu0 0.0
      %955 = vmatpush1.msra.mxu0 0.0
      %956 = vmatprep.subr.mxu0 0.0
      %957 = vmatpush1.msra.mxu0 0.0
      %958 = vmatprep.subr.mxu0 0.0
      %959 = vmatpush1.msra.mxu0 0.0
      %960 = vmatprep.subr.mxu0 0.0
      %961 = vmatpush1.msra.mxu0 0.0
      %962 = vmatprep.subr.mxu0 0.0
      %963 = vmatpush1.msra.mxu0 0.0
      %964 = vmatprep.subr.mxu0 0.0
      %965 = vmatpush1.msra.mxu0 0.0
      %966 = vmatprep.subr.mxu0 0.0
      %967 = vmatpush1.msra.mxu0 0.0
      %968 = vmatprep.subr.mxu0 0.0
      %969 = vmatpush1.msra.mxu0 0.0
      %970 = vmatprep.subr.mxu0 0.0
      %971 = vmatpush1.msra.mxu0 0.0
      %972 = vmatprep.subr.mxu0 0.0
      %973 = vmatpush1.msra.mxu0 0.0
      %974 = vmatprep.subr.mxu0 0.0
      %975 = vmatpush1.msra.mxu0 0.0
      %976 = vmatprep.subr.mxu0 0.0
      %977 = vmatpush1.msra.mxu0 0.0
      %978 = vmatprep.subr.mxu0 0.0
      %979 = vmatpush1.msra.mxu0 0.0
      %980 = vmatprep.subr.mxu0 0.0
      %981 = vmatpush1.msra.mxu0 0.0
      %982 = vmatprep.subr.mxu0 0.0
      %983 = vmatpush1.msra.mxu0 0.0
      %984 = vmatprep.mubr.f32.mxu0 0.0
      %985 = vmatmul.mubr.f32.gmra.mrb[0].mxu0 %v915
      %v986 = vpop.f32.mrb[0].mxu0
      %v987 = vadd.f32 %v912, %v986
      %v988 = vpop.f32.mrb[0].mxu0
      %989 = vmatprep.mubr.f32.mxu0 0.0
      %990 = vmatmul.mubr.f32.gmra.mrb[0].mxu0 %v918
      %v991 = vpop.f32.mrb[0].mxu0
      %v992 = vadd.f32 %v912, %v991
      %v993 = vpop.f32.mrb[0].mxu0
      %994 = vdwg.mxu0
      %vm995 = vcmp.gt.f32.partialorder %v987, 0.0
      %vm996 = vcmp.gt.f32.partialorder %v992, 0.0
      %v997 = vmul.f32 %v987, 0.01
      %v998 = vmul.f32 %v992, 0.01
      %v999 = vsel %vm995, %v987, %v997
      %v1000 = vsel %vm996, %v992, %v998
      %1001 = vmatprep.subr.mxu0 0.0
      %1002 = vmatpush1.msra.mxu0 %v999
      %1003 = vmatprep.subr.mxu0 0.0
      %1004 = vmatpush1.msra.mxu0 %v1000
      %1005 = vmatprep.subr.mxu0 0.0
      %1006 = vmatpush1.msra.mxu0 0.0
      %1007 = vmatprep.subr.mxu0 0.0
      %1008 = vmatpush1.msra.mxu0 0.0
      %1009 = vmatprep.subr.mxu0 0.0
      %1010 = vmatpush1.msra.mxu0 0.0
      %1011 = vmatprep.subr.mxu0 0.0
      %1012 = vmatpush1.msra.mxu0 0.0
      %1013 = vmatprep.subr.mxu0 0.0
      %1014 = vmatpush1.msra.mxu0 0.0
      %1015 = vmatprep.subr.mxu0 0.0
      %1016 = vmatpush1.msra.mxu0 0.0
      %1017 = vmatprep.subr.mxu0 0.0
      %1018 = vmatpush1.msra.mxu0 0.0
      %1019 = vmatprep.subr.mxu0 0.0
      %1020 = vmatpush1.msra.mxu0 0.0
      %1021 = vmatprep.subr.mxu0 0.0
      %1022 = vmatpush1.msra.mxu0 0.0
      %1023 = vmatprep.subr.mxu0 0.0
      %1024 = vmatpush1.msra.mxu0 0.0
      %1025 = vmatprep.subr.mxu0 0.0
      %1026 = vmatpush1.msra.mxu0 0.0
      %1027 = vmatprep.subr.mxu0 0.0
      %1028 = vmatpush1.msra.mxu0 0.0
      %1029 = vmatprep.subr.mxu0 0.0
      %1030 = vmatpush1.msra.mxu0 0.0
      %1031 = vmatprep.subr.mxu0 0.0
      %1032 = vmatpush1.msra.mxu0 0.0
      %1033 = vmatprep.subr.mxu0 0.0
      %1034 = vmatpush1.msra.mxu0 0.0
      %1035 = vmatprep.subr.mxu0 0.0
      %1036 = vmatpush1.msra.mxu0 0.0
      %1037 = vmatprep.subr.mxu0 0.0
      %1038 = vmatpush1.msra.mxu0 0.0
      %1039 = vmatprep.subr.mxu0 0.0
      %1040 = vmatpush1.msra.mxu0 0.0
      %1041 = vmatprep.subr.mxu0 0.0
      %1042 = vmatpush1.msra.mxu0 0.0
      %1043 = vmatprep.subr.mxu0 0.0
      %1044 = vmatpush1.msra.mxu0 0.0
      %1045 = vmatprep.subr.mxu0 0.0
      %1046 = vmatpush1.msra.mxu0 0.0
      %1047 = vmatprep.subr.mxu0 0.0
      %1048 = vmatpush1.msra.mxu0 0.0
      %1049 = vmatprep.subr.mxu0 0.0
      %1050 = vmatpush1.msra.mxu0 0.0
      %1051 = vmatprep.subr.mxu0 0.0
      %1052 = vmatpush1.msra.mxu0 0.0
      %1053 = vmatprep.subr.mxu0 0.0
      %1054 = vmatpush1.msra.mxu0 0.0
      %1055 = vmatprep.subr.mxu0 0.0
      %1056 = vmatpush1.msra.mxu0 0.0
      %1057 = vmatprep.subr.mxu0 0.0
      %1058 = vmatpush1.msra.mxu0 0.0
      %1059 = vmatprep.subr.mxu0 0.0
      %1060 = vmatpush1.msra.mxu0 0.0
      %1061 = vmatprep.subr.mxu0 0.0
      %1062 = vmatpush1.msra.mxu0 0.0
      %1063 = vmatprep.subr.mxu0 0.0
      %1064 = vmatpush1.msra.mxu0 0.0
      %1065 = vmatprep.mubr.f32.mxu0 0.0
      %1066 = vmatmul.mubr.f32.gmra.mrb[0].mxu0 %v463
      %v1067 = vpop.f32.mrb[0].mxu0
      %v1068 = vadd.f32 0.0, %v1067
      %v1069 = vpop.f32.mrb[0].mxu0
      %1070 = vmatprep.mubr.f32.mxu0 0.0
      %1071 = vmatmul.mubr.f32.gmra.mrb[0].mxu0 %v466
      %v1072 = vpop.f32.mrb[0].mxu0
      %v1073 = vadd.f32 0.0, %v1072
      %v1074 = vpop.f32.mrb[0].mxu0
      %1075 = vdwg.mxu0
      %1076 = vmatprep.subr.mxu0 0.0
      %1077 = vmatpush1.msra.mxu0 %v999
      %1078 = vmatprep.subr.mxu0 0.0
      %1079 = vmatpush1.msra.mxu0 %v1000
      %1080 = vmatprep.subr.mxu0 0.0
      %1081 = vmatpush1.msra.mxu0 0.0
      %1082 = vmatprep.subr.mxu0 0.0
      %1083 = vmatpush1.msra.mxu0 0.0
      %1084 = vmatprep.subr.mxu0 0.0
      %1085 = vmatpush1.msra.mxu0 0.0
      %1086 = vmatprep.subr.mxu0 0.0
      %1087 = vmatpush1.msra.mxu0 0.0
      %1088 = vmatprep.subr.mxu0 0.0
      %1089 = vmatpush1.msra.mxu0 0.0
      %1090 = vmatprep.subr.mxu0 0.0
      %1091 = vmatpush1.msra.mxu0 0.0
      %1092 = vmatprep.subr.mxu0 0.0
      %1093 = vmatpush1.msra.mxu0 0.0
      %1094 = vmatprep.subr.mxu0 0.0
      %1095 = vmatpush1.msra.mxu0 0.0
      %1096 = vmatprep.subr.mxu0 0.0
      %1097 = vmatpush1.msra.mxu0 0.0
      %1098 = vmatprep.subr.mxu0 0.0
      %1099 = vmatpush1.msra.mxu0 0.0
      %1100 = vmatprep.subr.mxu0 0.0
      %1101 = vmatpush1.msra.mxu0 0.0
      %1102 = vmatprep.subr.mxu0 0.0
      %1103 = vmatpush1.msra.mxu0 0.0
      %1104 = vmatprep.subr.mxu0 0.0
      %1105 = vmatpush1.msra.mxu0 0.0
      %1106 = vmatprep.subr.mxu0 0.0
      %1107 = vmatpush1.msra.mxu0 0.0
      %1108 = vmatprep.subr.mxu0 0.0
      %1109 = vmatpush1.msra.mxu0 0.0
      %1110 = vmatprep.subr.mxu0 0.0
      %1111 = vmatpush1.msra.mxu0 0.0
      %1112 = vmatprep.subr.mxu0 0.0
      %1113 = vmatpush1.msra.mxu0 0.0
      %1114 = vmatprep.subr.mxu0 0.0
      %1115 = vmatpush1.msra.mxu0 0.0
      %1116 = vmatprep.subr.mxu0 0.0
      %1117 = vmatpush1.msra.mxu0 0.0
      %1118 = vmatprep.subr.mxu0 0.0
      %1119 = vmatpush1.msra.mxu0 0.0
      %1120 = vmatprep.subr.mxu0 0.0
      %1121 = vmatpush1.msra.mxu0 0.0
      %1122 = vmatprep.subr.mxu0 0.0
      %1123 = vmatpush1.msra.mxu0 0.0
      %1124 = vmatprep.subr.mxu0 0.0
      %1125 = vmatpush1.msra.mxu0 0.0
      %1126 = vmatprep.subr.mxu0 0.0
      %1127 = vmatpush1.msra.mxu0 0.0
      %1128 = vmatprep.subr.mxu0 0.0
      %1129 = vmatpush1.msra.mxu0 0.0
      %1130 = vmatprep.subr.mxu0 0.0
      %1131 = vmatpush1.msra.mxu0 0.0
      %1132 = vmatprep.subr.mxu0 0.0
      %1133 = vmatpush1.msra.mxu0 0.0
      %1134 = vmatprep.subr.mxu0 0.0
      %1135 = vmatpush1.msra.mxu0 0.0
      %1136 = vmatprep.subr.mxu0 0.0
      %1137 = vmatpush1.msra.mxu0 0.0
      %1138 = vmatprep.subr.mxu0 0.0
      %1139 = vmatpush1.msra.mxu0 0.0
      %1140 = vmatprep.mubr.f32.mxu0 0.0
      %1141 = vmatmul.mubr.f32.gmra.mrb[0].mxu0 %v544
      %v1142 = vpop.f32.mrb[0].mxu0
      %v1143 = vadd.f32 0.0, %v1142
      %v1144 = vpop.f32.mrb[0].mxu0
      %1145 = vmatprep.mubr.f32.mxu0 0.0
      %1146 = vmatmul.mubr.f32.gmra.mrb[0].mxu0 %v547
      %v1147 = vpop.f32.mrb[0].mxu0
      %v1148 = vadd.f32 0.0, %v1147
      %v1149 = vpop.f32.mrb[0].mxu0
      %1150 = vdwg.mxu0
      %s1151 = scalar_lea.vmem %s7, 64
      %v1152 = vld [vmem:[%s1151] sm:$0xff]
      %v1153 = vld [vmem:[%s1151 + $0x8] sm:$0xff]
      %v1154 = vld [vmem:[%s1151 + $0x10] sm:$0xff]
      %v1155 = vld [vmem:[%s1151 + $0x18] sm:$0xff]
      %v1156 = vld [vmem:[%s1151 + $0x20] sm:$0xff]
      %v1157 = vld [vmem:[%s1151 + $0x28] sm:$0xff]
      %v1158 = vld [vmem:[%s1151 + $0x30] sm:$0xff]
      %v1159 = vld [vmem:[%s1151 + $0x38] sm:$0xff]
      %v1160 = vld [vmem:[%s7] sm:$0xff]
      %v1161 = vld [vmem:[%s7 + $0x8] sm:$0xff]
      %v1162 = vld [vmem:[%s7 + $0x10] sm:$0xff]
      %v1163 = vld [vmem:[%s7 + $0x18] sm:$0xff]
      %v1164 = vld [vmem:[%s7 + $0x20] sm:$0xff]
      %v1165 = vld [vmem:[%s7 + $0x28] sm:$0xff]
      %v1166 = vld [vmem:[%s7 + $0x30] sm:$0xff]
      %v1167 = vld [vmem:[%s7 + $0x38] sm:$0xff]
      %v1169 = vsel %vm373, %v1068, 0
      %v1172 = vsel %vm373, %v1073, 0
      %1174 = vmatprep.subr.mxu0 0.0
      %1175 = vmatpush1.msra.mxu0 %v1160
      %1176 = vmatprep.subr.mxu0 0.0
      %1177 = vmatpush1.msra.mxu0 %v1161
      %1178 = vmatprep.subr.mxu0 0.0
      %1179 = vmatpush1.msra.mxu0 %v1162
      %1180 = vmatprep.subr.mxu0 0.0
      %1181 = vmatpush1.msra.mxu0 %v1163
      %1182 = vmatprep.subr.mxu0 0.0
      %1183 = vmatpush1.msra.mxu0 %v1164
      %1184 = vmatprep.subr.mxu0 0.0
      %1185 = vmatpush1.msra.mxu0 %v1165
      %1186 = vmatprep.subr.mxu0 0.0
      %1187 = vmatpush1.msra.mxu0 %v1166
      %1188 = vmatprep.subr.mxu0 0.0
      %1189 = vmatpush1.msra.mxu0 %v1167
      %1190 = vmatprep.subr.mxu0 0.0
      %1191 = vmatpush1.msra.mxu0 0.0
      %1192 = vmatprep.subr.mxu0 0.0
      %1193 = vmatpush1.msra.mxu0 0.0
      %1194 = vmatprep.subr.mxu0 0.0
      %1195 = vmatpush1.msra.mxu0 0.0
      %1196 = vmatprep.subr.mxu0 0.0
      %1197 = vmatpush1.msra.mxu0 0.0
      %1198 = vmatprep.subr.mxu0 0.0
      %1199 = vmatpush1.msra.mxu0 0.0
      %1200 = vmatprep.subr.mxu0 0.0
      %1201 = vmatpush1.msra.mxu0 0.0
      %1202 = vmatprep.subr.mxu0 0.0
      %1203 = vmatpush1.msra.mxu0 0.0
      %1204 = vmatprep.subr.mxu0 0.0
      %1205 = vmatpush1.msra.mxu0 0.0
      %1206 = vmatprep.subr.mxu0 0.0
      %1207 = vmatpush1.msra.mxu0 0.0
      %1208 = vmatprep.subr.mxu0 0.0
      %1209 = vmatpush1.msra.mxu0 0.0
      %1210 = vmatprep.subr.mxu0 0.0
      %1211 = vmatpush1.msra.mxu0 0.0
      %1212 = vmatprep.subr.mxu0 0.0
      %1213 = vmatpush1.msra.mxu0 0.0
      %1214 = vmatprep.subr.mxu0 0.0
      %1215 = vmatpush1.msra.mxu0 0.0
      %1216 = vmatprep.subr.mxu0 0.0
      %1217 = vmatpush1.msra.mxu0 0.0
      %1218 = vmatprep.subr.mxu0 0.0
      %1219 = vmatpush1.msra.mxu0 0.0
      %1220 = vmatprep.subr.mxu0 0.0
      %1221 = vmatpush1.msra.mxu0 0.0
      %1222 = vmatprep.subr.mxu0 0.0
      %1223 = vmatpush1.msra.mxu0 0.0
      %1224 = vmatprep.subr.mxu0 0.0
      %1225 = vmatpush1.msra.mxu0 0.0
      %1226 = vmatprep.subr.mxu0 0.0
      %1227 = vmatpush1.msra.mxu0 0.0
      %1228 = vmatprep.subr.mxu0 0.0
      %1229 = vmatpush1.msra.mxu0 0.0
      %1230 = vmatprep.subr.mxu0 0.0
      %1231 = vmatpush1.msra.mxu0 0.0
      %1232 = vmatprep.subr.mxu0 0.0
      %1233 = vmatpush1.msra.mxu0 0.0
      %1234 = vmatprep.subr.mxu0 0.0
      %1235 = vmatpush1.msra.mxu0 0.0
      %1236 = vmatprep.subr.mxu0 0.0
      %1237 = vmatpush1.msra.mxu0 0.0
      %1238 = vmatprep.mubr.f32.mxu0 0.0
      %1239 = vmatmul.mubr.f32.gmra.mrb[0].mxu0 %v1169
      %v1240 = vpop.f32.mrb[0].mxu0
      %v1241 = vadd.f32 0.0, %v1240
      %v1242 = vpop.f32.mrb[0].mxu0
      %1243 = vmatprep.mubr.f32.mxu0 0.0
      %1244 = vmatmul.mubr.f32.gmra.mrb[0].mxu0 %v1172
      %v1245 = vpop.f32.mrb[0].mxu0
      %v1246 = vadd.f32 0.0, %v1245
      %v1247 = vpop.f32.mrb[0].mxu0
      %1248 = vdwg.mxu0
      %v1250 = vsel %vm373, %v999, 0
      %v1253 = vsel %vm373, %v1000, 0
      %1255 = vmatprep.subr.mxu0 0.0
      %1256 = vmatpush1.msra.mxu0 %v1152
      %1257 = vmatprep.subr.mxu0 0.0
      %1258 = vmatpush1.msra.mxu0 %v1153
      %1259 = vmatprep.subr.mxu0 0.0
      %1260 = vmatpush1.msra.mxu0 %v1154
      %1261 = vmatprep.subr.mxu0 0.0
      %1262 = vmatpush1.msra.mxu0 %v1155
      %1263 = vmatprep.subr.mxu0 0.0
      %1264 = vmatpush1.msra.mxu0 %v1156
      %1265 = vmatprep.subr.mxu0 0.0
      %1266 = vmatpush1.msra.mxu0 %v1157
      %1267 = vmatprep.subr.mxu0 0.0
      %1268 = vmatpush1.msra.mxu0 %v1158
      %1269 = vmatprep.subr.mxu0 0.0
      %1270 = vmatpush1.msra.mxu0 %v1159
      %1271 = vmatprep.subr.mxu0 0.0
      %1272 = vmatpush1.msra.mxu0 0.0
      %1273 = vmatprep.subr.mxu0 0.0
      %1274 = vmatpush1.msra.mxu0 0.0
      %1275 = vmatprep.subr.mxu0 0.0
      %1276 = vmatpush1.msra.mxu0 0.0
      %1277 = vmatprep.subr.mxu0 0.0
      %1278 = vmatpush1.msra.mxu0 0.0
      %1279 = vmatprep.subr.mxu0 0.0
      %1280 = vmatpush1.msra.mxu0 0.0
      %1281 = vmatprep.subr.mxu0 0.0
      %1282 = vmatpush1.msra.mxu0 0.0
      %1283 = vmatprep.subr.mxu0 0.0
      %1284 = vmatpush1.msra.mxu0 0.0
      %1285 = vmatprep.subr.mxu0 0.0
      %1286 = vmatpush1.msra.mxu0 0.0
      %1287 = vmatprep.subr.mxu0 0.0
      %1288 = vmatpush1.msra.mxu0 0.0
      %1289 = vmatprep.subr.mxu0 0.0
      %1290 = vmatpush1.msra.mxu0 0.0
      %1291 = vmatprep.subr.mxu0 0.0
      %1292 = vmatpush1.msra.mxu0 0.0
      %1293 = vmatprep.subr.mxu0 0.0
      %1294 = vmatpush1.msra.mxu0 0.0
      %1295 = vmatprep.subr.mxu0 0.0
      %1296 = vmatpush1.msra.mxu0 0.0
      %1297 = vmatprep.subr.mxu0 0.0
      %1298 = vmatpush1.msra.mxu0 0.0
      %1299 = vmatprep.subr.mxu0 0.0
      %1300 = vmatpush1.msra.mxu0 0.0
      %1301 = vmatprep.subr.mxu0 0.0
      %1302 = vmatpush1.msra.mxu0 0.0
      %1303 = vmatprep.subr.mxu0 0.0
      %1304 = vmatpush1.msra.mxu0 0.0
      %1305 = vmatprep.subr.mxu0 0.0
      %1306 = vmatpush1.msra.mxu0 0.0
      %1307 = vmatprep.subr.mxu0 0.0
      %1308 = vmatpush1.msra.mxu0 0.0
      %1309 = vmatprep.subr.mxu0 0.0
      %1310 = vmatpush1.msra.mxu0 0.0
      %1311 = vmatprep.subr.mxu0 0.0
      %1312 = vmatpush1.msra.mxu0 0.0
      %1313 = vmatprep.subr.mxu0 0.0
      %1314 = vmatpush1.msra.mxu0 0.0
      %1315 = vmatprep.subr.mxu0 0.0
      %1316 = vmatpush1.msra.mxu0 0.0
      %1317 = vmatprep.subr.mxu0 0.0
      %1318 = vmatpush1.msra.mxu0 0.0
      %1319 = vmatprep.mubr.f32.mxu0 0.0
      %1320 = vmatmul.mubr.f32.gmra.mrb[0].mxu0 %v1250
      %v1321 = vpop.f32.mrb[0].mxu0
      %v1322 = vadd.f32 %v1241, %v1321
      %v1323 = vpop.f32.mrb[0].mxu0
      %1324 = vmatprep.mubr.f32.mxu0 0.0
      %1325 = vmatmul.mubr.f32.gmra.mrb[0].mxu0 %v1253
      %v1326 = vpop.f32.mrb[0].mxu0
      %v1327 = vadd.f32 %v1246, %v1326
      %v1328 = vpop.f32.mrb[0].mxu0
      %1329 = vdwg.mxu0
      %s1330 = scalar_lea.vmem %s7, 128
      %v1331 = vld [vmem:[%s1330] sm:$0xff]
      %v1332 = vld [vmem:[%s1330 + $0x8] sm:$0xff]
      %v1333 = vld [vmem:[%s1330 + $0x10] sm:$0xff]
      %v1334 = vld [vmem:[%s1330 + $0x18] sm:$0xff]
      %v1335 = vld [vmem:[%s1330 + $0x20] sm:$0xff]
      %v1336 = vld [vmem:[%s1330 + $0x28] sm:$0xff]
      %v1337 = vld [vmem:[%s1330 + $0x30] sm:$0xff]
      %v1338 = vld [vmem:[%s1330 + $0x38] sm:$0xff]
      %v1340 = vsel %vm373, %v1143, 0
      %v1343 = vsel %vm373, %v1148, 0
      %1345 = vmatprep.subr.mxu0 0.0
      %1346 = vmatpush1.msra.mxu0 %v1331
      %1347 = vmatprep.subr.mxu0 0.0
      %1348 = vmatpush1.msra.mxu0 %v1332
      %1349 = vmatprep.subr.mxu0 0.0
      %1350 = vmatpush1.msra.mxu0 %v1333
      %1351 = vmatprep.subr.mxu0 0.0
      %1352 = vmatpush1.msra.mxu0 %v1334
      %1353 = vmatprep.subr.mxu0 0.0
      %1354 = vmatpush1.msra.mxu0 %v1335
      %1355 = vmatprep.subr.mxu0 0.0
      %1356 = vmatpush1.msra.mxu0 %v1336
      %1357 = vmatprep.subr.mxu0 0.0
      %1358 = vmatpush1.msra.mxu0 %v1337
      %1359 = vmatprep.subr.mxu0 0.0
      %1360 = vmatpush1.msra.mxu0 %v1338
      %1361 = vmatprep.subr.mxu0 0.0
      %1362 = vmatpush1.msra.mxu0 0.0
      %1363 = vmatprep.subr.mxu0 0.0
      %1364 = vmatpush1.msra.mxu0 0.0
      %1365 = vmatprep.subr.mxu0 0.0
      %1366 = vmatpush1.msra.mxu0 0.0
      %1367 = vmatprep.subr.mxu0 0.0
      %1368 = vmatpush1.msra.mxu0 0.0
      %1369 = vmatprep.subr.mxu0 0.0
      %1370 = vmatpush1.msra.mxu0 0.0
      %1371 = vmatprep.subr.mxu0 0.0
      %1372 = vmatpush1.msra.mxu0 0.0
      %1373 = vmatprep.subr.mxu0 0.0
      %1374 = vmatpush1.msra.mxu0 0.0
      %1375 = vmatprep.subr.mxu0 0.0
      %1376 = vmatpush1.msra.mxu0 0.0
      %1377 = vmatprep.subr.mxu0 0.0
      %1378 = vmatpush1.msra.mxu0 0.0
      %1379 = vmatprep.subr.mxu0 0.0
      %1380 = vmatpush1.msra.mxu0 0.0
      %1381 = vmatprep.subr.mxu0 0.0
      %1382 = vmatpush1.msra.mxu0 0.0
      %1383 = vmatprep.subr.mxu0 0.0
      %1384 = vmatpush1.msra.mxu0 0.0
      %1385 = vmatprep.subr.mxu0 0.0
      %1386 = vmatpush1.msra.mxu0 0.0
      %1387 = vmatprep.subr.mxu0 0.0
      %1388 = vmatpush1.msra.mxu0 0.0
      %1389 = vmatprep.subr.mxu0 0.0
      %1390 = vmatpush1.msra.mxu0 0.0
      %1391 = vmatprep.subr.mxu0 0.0
      %1392 = vmatpush1.msra.mxu0 0.0
      %1393 = vmatprep.subr.mxu0 0.0
      %1394 = vmatpush1.msra.mxu0 0.0
      %1395 = vmatprep.subr.mxu0 0.0
      %1396 = vmatpush1.msra.mxu0 0.0
      %1397 = vmatprep.subr.mxu0 0.0
      %1398 = vmatpush1.msra.mxu0 0.0
      %1399 = vmatprep.subr.mxu0 0.0
      %1400 = vmatpush1.msra.mxu0 0.0
      %1401 = vmatprep.subr.mxu0 0.0
      %1402 = vmatpush1.msra.mxu0 0.0
      %1403 = vmatprep.subr.mxu0 0.0
      %1404 = vmatpush1.msra.mxu0 0.0
      %1405 = vmatprep.subr.mxu0 0.0
      %1406 = vmatpush1.msra.mxu0 0.0
      %1407 = vmatprep.subr.mxu0 0.0
      %1408 = vmatpush1.msra.mxu0 0.0
      %1409 = vmatprep.mubr.f32.mxu0 0.0
      %1410 = vmatmul.mubr.f32.gmra.mrb[0].mxu0 %v1340
      %v1411 = vpop.f32.mrb[0].mxu0
      %v1412 = vadd.f32 0.0, %v1411
      %v1413 = vpop.f32.mrb[0].mxu0
      %1414 = vmatprep.mubr.f32.mxu0 0.0
      %1415 = vmatmul.mubr.f32.gmra.mrb[0].mxu0 %v1343
      %v1416 = vpop.f32.mrb[0].mxu0
      %v1417 = vadd.f32 0.0, %v1416
      %v1418 = vpop.f32.mrb[0].mxu0
      %1419 = vdwg.mxu0
      %v1420 = vadd.f32 %v1322, %v1412
      %v1421 = vadd.f32 %v1327, %v1417
      %v1422 = vld [vmem:[%s8] sm:$0x1]
      %v1424 = vlaneseq
      %v1425 = vshrl.u32 %v1424, 7
      %v1426 = vsub.s32 0, %v1425
      %v1427 = vrot.slane %v1422, %v1426
      %v1429 = vadd.f32 %v1420, %v1427
      %v1430 = vadd.f32 %v1421, %v1427
      %vm1431 = vcmp.gt.f32.partialorder %v1429, 0.0
      %vm1432 = vcmp.gt.f32.partialorder %v1430, 0.0
      %v1433 = vmul.f32 %v1429, 0.01
      %v1434 = vmul.f32 %v1430, 0.01
      %v1435 = vsel %vm1431, %v1429, %v1433
      %v1436 = vsel %vm1432, %v1430, %v1434
      %v1437 = vadd.f32 %v897, %v1435
      %v1438 = vadd.f32 %v898, %v1436
      %1439 = vst.msk [vmem:[%s334] sm:$0xff] %vm373, %v1437
      %1440 = vst.msk [vmem:[%s334 + $0x8] sm:$0xff] %vm373, %v1438
      %s1441 = smul.u32 2, %s20
      %p1442 = scmp.lt.s32.totalorder %s1441, 3
      %s1443 = scalar_select %p1442, %s1441, 3
      %s1444 = smul.addr %s1443, 8
      %s1445 = scalar_lea.vmem %s9, %s1444
      // Predicated region
      $region57: #{darknet_residual_block.1} parent=55 // pred_check
        %p1446 = pneg %p232
      $region58: #{darknet_residual_block.1} parent=55 // pred_check_branch
        %1448 = sbr.rel (%p1446) target = $region60
      $region59: #{darknet_residual_block.1} parent=55 // pred_region
        %s1449 = smul.u32 2, %s20
      $region60: #{darknet_residual_block.1} parent=55 // pred_fallthru
        _
    $region56: #{darknet_residual_block.1} parent=5 // pred_fallthru
      _
    %p1450 = scmp.le.s32.totalorder 2, %s15
    // Predicated region
    $region61: #{darknet_residual_block.1} parent=5 // pred_check
      %p1451 = pneg %p1450
    $region62: #{darknet_residual_block.1} parent=5 // pred_check_branch
      %1453 = sbr.rel (%p1451) target = $region64
    $region63: #{darknet_residual_block.1} parent=5 // pred_region
      %s1454 = ssub.s32 %s15, 2
      // Predicated region
      $region65: #{darknet_residual_block.1} parent=63 // pred_check
        %p1455 = pneg %p238
      $region66: #{darknet_residual_block.1} parent=63 // pred_check_branch
        %1457 = sbr.rel (%p1455) target = $region68
      $region67: #{darknet_residual_block.1} parent=63 // pred_region
        %s1458 = smul.u32 2, %s21
        %p1459 = scmp.lt.s32.totalorder %s1458, 3
        %s1460 = scalar_select %p1459, %s1458, 3
        %s1461 = smul.addr %s1460, 8
        %s1462 = scalar_lea.vmem %s9, %s1461
      $region68: #{darknet_residual_block.1} parent=63 // pred_fallthru
        _
    $region64: #{darknet_residual_block.1} parent=5 // pred_fallthru
      _
  $region6: #{darknet_residual_block.1} parent=0 // loop_footer
    %s19 = sadd.s32 1, %s15
  $region7: #{darknet_residual_block.1} parent=0 // loop_footer_branch
    %14 = sbr.rel target = $region3
  $region8: #{darknet_residual_block.1} parent=0 // loop_exit
    _

</llo_original>
